<compile_context>
chip_gen: v5e
topology: v5e:2x2
jax: 0.10.0
libtpu: 0.0.40
codegen_flags: <defaults>
</compile_context>

<pallas_src>
import functools

import numpy as np

import jax
import jax.numpy as jnp
from jax.experimental import pallas as pl
from jax.experimental.pallas import tpu as pltpu

_BN_EPS = 1e-5
# Lane tile over M = B*Ho*Wo. 256 also exercises the multi-tile path at small
# sizes and suits v5e; bump towards 512-1024 for large images on v6e/v7x.
_MTILE = 256


def _round_up(x, m):
    return (x + m - 1) // m * m


# ----------------------------------------------------------------------------
# Pallas kernels (lane-dense [N, M] outputs, M on the 128-lane axis)
# ----------------------------------------------------------------------------
def _conv_bn_relu_kernel(p_ref, w_ref, g_ref, be_ref, o_ref, sum_ref, sq_ref,
                         *, mt, m_real):
    """One M-tile of  out = relu(BN_batch(W @ patches^T)).

    Grid axis 0 walks M tiles ("arbitrary"): the [N, M_pad] output is VMEM
    resident across the grid, per-channel sum / sum-of-squares accumulate in
    scratch, and a pl.when finalize pass on the last tile normalizes in place.
    Conv bias is omitted: it cancels exactly under training-mode BatchNorm.
    """
    i = pl.program_id(0)

    @pl.when(i == 0)
    def _init():
        sum_ref[...] = jnp.zeros_like(sum_ref)
        sq_ref[...] = jnp.zeros_like(sq_ref)

    # [N_pad, K] @ [K, mt] -> [N_pad, mt]; bf16 operands, f32 MXU accumulation.
    conv = jnp.dot(w_ref[...], p_ref[...], preferred_element_type=jnp.float32)

    # Lane-axis (XLU) per-channel reductions; padded M columns are zero.
    sum_ref[...] += jnp.sum(conv, axis=1, keepdims=True)
    sq_ref[...] += jnp.sum(conv * conv, axis=1, keepdims=True)

    start = pl.multiple_of(i * mt, 128)
    o_ref[:, pl.ds(start, mt)] = conv

    @pl.when(i == pl.num_programs(0) - 1)
    def _finalize():
        inv_m = 1.0 / float(m_real)            # real (unpadded) element count
        mean = sum_ref[...] * inv_m
        var = sq_ref[...] * inv_m - mean * mean
        scale = g_ref[...] * jax.lax.rsqrt(var + _BN_EPS)
        shift = be_ref[...] - mean * scale
        o_ref[...] = jnp.maximum(o_ref[...] * scale + shift, 0.0)


def _conv_bias_sigmoid_kernel(p_ref, w_ref, b_ref, o_ref):
    """Final decoder layer: conv + bias + sigmoid, independent M tiles."""
    conv = jnp.dot(w_ref[...], p_ref[...], preferred_element_type=jnp.float32)
    conv = conv + b_ref[...]
    # EUP-friendly sigmoid: exp and the approximate reciprocal both hit the EUP slot.
    o_ref[...] = pl.reciprocal(1.0 + jnp.exp(-conv), approx=True)


# ----------------------------------------------------------------------------
# pallas_call wrappers
# ----------------------------------------------------------------------------
def _m_tiling(m_real):
    m_pad = _round_up(m_real, 128)
    if m_pad > _MTILE:
        m_pad = _round_up(m_real, _MTILE)
        mt = _MTILE
    else:
        mt = m_pad
    return m_pad, mt


def _vmem_limit_bytes(k, n_pad, mt, m_pad, resident_out):
    patches = 2 * k * mt * 2                       # double-buffered bf16 tiles
    weight = n_pad * k * 2
    out = n_pad * (m_pad if resident_out else 2 * mt) * 4
    scratch = 8 * n_pad * 128 * 4
    est = patches + weight + out + scratch
    return int(min(max(2 * est, 16 << 20), 40 << 20))   # fits v7x's 64 MiB VMEM


def _conv_bn_relu(patches_t, w_bf16, gamma, beta):
    k, m_real = patches_t.shape
    n_pad = w_bf16.shape[0]
    m_pad, mt = _m_tiling(m_real)
    pt = jnp.pad(patches_t, ((0, 0), (0, m_pad - m_real))).astype(jnp.bfloat16)
    kernel = functools.partial(_conv_bn_relu_kernel, mt=mt, m_real=m_real)
    return pl.pallas_call(
        kernel,
        out_shape=jax.ShapeDtypeStruct((n_pad, m_pad), jnp.float32),
        grid_spec=pltpu.PrefetchScalarGridSpec(
            num_scalar_prefetch=0,
            grid=(m_pad // mt,),
            in_specs=[
                pl.BlockSpec((k, mt), lambda i: (0, i)),
                pl.BlockSpec((n_pad, k), lambda i: (0, 0)),
                pl.BlockSpec((n_pad, 1), lambda i: (0, 0)),
                pl.BlockSpec((n_pad, 1), lambda i: (0, 0)),
            ],
            out_specs=pl.BlockSpec((n_pad, m_pad), lambda i: (0, 0)),
            scratch_shapes=[pltpu.VMEM((n_pad, 1), jnp.float32),
                            pltpu.VMEM((n_pad, 1), jnp.float32)],
        ),
        compiler_params=pltpu.CompilerParams(
            dimension_semantics=("arbitrary",),     # BN stats accumulate across tiles
            vmem_limit_bytes=_vmem_limit_bytes(k, n_pad, mt, m_pad, True)),
    )(pt, w_bf16, gamma, beta)


def _conv_bias_sigmoid(patches_t, w_bf16, bias):
    k, m_real = patches_t.shape
    n_pad = w_bf16.shape[0]
    m_pad, mt = _m_tiling(m_real)
    pt = jnp.pad(patches_t, ((0, 0), (0, m_pad - m_real))).astype(jnp.bfloat16)
    return pl.pallas_call(
        _conv_bias_sigmoid_kernel,
        out_shape=jax.ShapeDtypeStruct((n_pad, m_pad), jnp.float32),
        grid_spec=pltpu.PrefetchScalarGridSpec(
            num_scalar_prefetch=0,
            grid=(m_pad // mt,),
            in_specs=[
                pl.BlockSpec((k, mt), lambda i: (0, i)),
                pl.BlockSpec((n_pad, k), lambda i: (0, 0)),
                pl.BlockSpec((n_pad, 1), lambda i: (0, 0)),
            ],
            out_specs=pl.BlockSpec((n_pad, mt), lambda i: (0, i)),
        ),
        compiler_params=pltpu.CompilerParams(
            dimension_semantics=("parallel",),      # v7x: both TCs split M tiles
            vmem_limit_bytes=_vmem_limit_bytes(k, n_pad, mt, m_pad, False)),
    )(pt, w_bf16, bias)


# ----------------------------------------------------------------------------
# JAX glue: transposed (lane-dense) im2col with fused upsample / padding masks
# ----------------------------------------------------------------------------
def _gather_patches_t(x_cbhw, out_hw, idx_fn):
    """Transposed im2col: [Cin*9, B*Ho*Wo], K flattened in PyTorch (c, kh, kw) order.

    idx_fn(di, dj) -> (si[Ho], sj[Wo], valid[Ho, Wo]) static numpy index arrays
    into x's H/W axes; `valid` zeroes out-of-bounds (zero-padding) taps.  The
    nearest 2x upsample of the decoder is fused into the indices, so neither a
    padded nor an upsampled activation tensor is ever materialized.
    """
    c, b, _, _ = x_cbhw.shape
    ho, wo = out_hw
    slabs = []
    for di in range(3):
        for dj in range(3):
            si, sj, valid = idx_fn(di, dj)
            slab = x_cbhw[:, :, si, :][:, :, :, sj]          # [C, B, Ho, Wo]
            slabs.append(slab * jnp.asarray(valid, x_cbhw.dtype))
    pt = jnp.stack(slabs, axis=1)                            # [C, 9, B, Ho, Wo]
    return pt.reshape(c * 9, b * ho * wo)


def _idx_conv_s2(h, w):
    """3x3 conv, stride 2, pad 1."""
    ho, wo = (h - 1) // 2 + 1, (w - 1) // 2 + 1

    def idx_fn(di, dj):
        ii = 2 * np.arange(ho) + di - 1
        jj = 2 * np.arange(wo) + dj - 1
        vi = (ii >= 0) & (ii < h)
        vj = (jj >= 0) & (jj < w)
        si = np.clip(ii, 0, h - 1)
        sj = np.clip(jj, 0, w - 1)
        return si, sj, (vi[:, None] & vj[None, :]).astype(np.float32)

    return (ho, wo), idx_fn


def _idx_up2_conv_s1(h, w):
    """nearest-upsample x2 fused with 3x3 conv, stride 1, pad 1."""
    ho, wo = 2 * h, 2 * w

    def idx_fn(di, dj):
        ii = np.arange(ho) + di - 1
        jj = np.arange(wo) + dj - 1
        vi = (ii >= 0) & (ii < ho)
        vj = (jj >= 0) & (jj < wo)
        si = np.clip(ii, 0, ho - 1) // 2      # floor(i/2): nearest-neighbor x2
        sj = np.clip(jj, 0, wo - 1) // 2
        return si, sj, (vi[:, None] & vj[None, :]).astype(np.float32)

    return (ho, wo), idx_fn


# ----------------------------------------------------------------------------
# Parameters and forward pass
# ----------------------------------------------------------------------------
def _init_conv_params(key, c_in, c_out, kh=3, kw=3):
    # PyTorch default Conv2d init: U(-1/sqrt(fan_in), 1/sqrt(fan_in)).
    kw_key, kb_key = jax.random.split(key)
    fan_in = c_in * kh * kw
    bound = 1.0 / float(np.sqrt(fan_in))
    w = jax.random.uniform(kw_key, (c_out, fan_in), jnp.float32, -bound, bound)
    b = jax.random.uniform(kb_key, (c_out,), jnp.float32, -bound, bound)
    n_pad = _round_up(c_out, 8)
    w_pad = jnp.zeros((n_pad, fan_in), jnp.float32).at[:c_out].set(w)
    b_pad = jnp.zeros((n_pad, 1), jnp.float32).at[:c_out, 0].set(b)
    gamma = jnp.ones((n_pad, 1), jnp.float32)    # BatchNorm2d affine init
    beta = jnp.zeros((n_pad, 1), jnp.float32)
    return dict(w=w_pad.astype(jnp.bfloat16), b=b_pad, gamma=gamma, beta=beta,
                cout=c_out)


def build_autoencoder_params(in_ch=4, base_ch=8, max_layer=2, seed=0):
    key = jax.random.PRNGKey(seed)
    keys = jax.random.split(key, 2 * max_layer)
    params = {"enc": [], "dec": []}
    chans = [in_ch] + [base_ch * (2 ** l) for l in range(max_layer)]
    for l in range(max_layer):
        params["enc"].append(_init_conv_params(keys[l], chans[l], chans[l + 1]))
    dec_chans = list(reversed(chans))
    for l in range(max_layer):
        params["dec"].append(
            _init_conv_params(keys[max_layer + l], dec_chans[l], dec_chans[l + 1]))
    return params


def autoencoder_forward(params, gt_nchw):
    """Equivalent of AutoencoderEnv.forward(gt); .detach() is a no-op in JAX."""
    x = gt_nchw.astype(jnp.float32).transpose(1, 0, 2, 3)   # [C, B, H, W]
    n_dec = len(params["dec"])

    # encoder: strided conv + BN(batch stats) + ReLU
    for p in params["enc"]:
        _, b, h, w = x.shape
        (ho, wo), idx_fn = _idx_conv_s2(h, w)
        pt = _gather_patches_t(x, (ho, wo), idx_fn)
        rows = _conv_bn_relu(pt, p["w"], p["gamma"], p["beta"])
        x = rows[:p["cout"], :b * ho * wo].reshape(p["cout"], b, ho, wo)

    # decoder: fused nearest-upsample x2 + conv; last layer bias + sigmoid, no BN
    for i, p in enumerate(params["dec"]):
        _, b, h, w = x.shape
        (ho, wo), idx_fn = _idx_up2_conv_s1(h, w)
        pt = _gather_patches_t(x, (ho, wo), idx_fn)
        if i == n_dec - 1:
            rows = _conv_bias_sigmoid(pt, p["w"], p["b"])
        else:
            rows = _conv_bn_relu(pt, p["w"], p["gamma"], p["beta"])
        x = rows[:p["cout"], :b * ho * wo].reshape(p["cout"], b, ho, wo)

    return x.transpose(1, 0, 2, 3)   # back to NCHW


def _reference_forward(params, gt_nchw):
    """Pure-JAX f32 reference (lax.conv + explicit upsample/BN) for validation."""
    x = gt_nchw.astype(jnp.float32)
    n_dec = len(params["dec"])

    def conv(x, p, stride):
        cin = x.shape[1]
        w4 = p["w"].astype(jnp.float32)[:p["cout"]].reshape(p["cout"], cin, 3, 3)
        return jax.lax.conv_general_dilated(
            x, w4, window_strides=(stride, stride), padding=((1, 1), (1, 1)),
            dimension_numbers=("NCHW", "OIHW", "NCHW"))

    def bn_relu(y, p):
        g = p["gamma"][:p["cout"], 0].reshape(1, -1, 1, 1)
        be = p["beta"][:p["cout"], 0].reshape(1, -1, 1, 1)
        mean = y.mean(axis=(0, 2, 3), keepdims=True)
        var = ((y - mean) ** 2).mean(axis=(0, 2, 3), keepdims=True)
        return jnp.maximum(g * (y - mean) * jax.lax.rsqrt(var + _BN_EPS) + be, 0.0)

    for p in params["enc"]:
        x = bn_relu(conv(x, p, 2), p)
    for i, p in enumerate(params["dec"]):
        x = jnp.repeat(jnp.repeat(x, 2, axis=2), 2, axis=3)
        y = conv(x, p, 1)
        if i == n_dec - 1:
            b = p["b"][:p["cout"], 0].reshape(1, -1, 1, 1)
            x = jax.nn.sigmoid(y + b)
        else:
            x = bn_relu(y, p)
    return x


if __name__ == "__main__":
    B, C, H, W = 2, 4, 16, 16
    gt = jax.random.uniform(jax.random.PRNGKey(0), (B, C, H, W), jnp.float32)

    params = build_autoencoder_params(in_ch=C, base_ch=8, max_layer=2, seed=0)
    fwd = jax.jit(functools.partial(autoencoder_forward, params))
    out = jax.block_until_ready(fwd(gt))

    assert out.shape == (B, C, H, W), out.shape
    assert out.dtype == jnp.float32
    assert bool(jnp.all(jnp.isfinite(out)))

    # Cross-check against an independent pure-JAX f32 reference of the same net
    # (bf16 MXU operands + approx-reciprocal sigmoid => loose tolerance).
    ref = jax.block_until_ready(_reference_forward(params, gt))
    assert float(jnp.max(jnp.abs(out - ref))) < 5e-2

    print("KERNEL_OK")
</pallas_src>

<mosaic_0001>
module attributes {stable_mosaic.version = 11 : i64} {
  func.func @_conv_bn_relu_kernel(%arg0: i32, %arg1: memref<36x128xbf16, #tpu.memory_space<vmem>>, %arg2: memref<8x36xbf16, #tpu.memory_space<vmem>>, %arg3: memref<8x1xf32, #tpu.memory_space<vmem>>, %arg4: memref<8x1xf32, #tpu.memory_space<vmem>>, %arg5: memref<8x128xf32, #tpu.memory_space<vmem>>, %arg6: memref<8x1xf32, #tpu.memory_space<vmem>>, %arg7: memref<8x1xf32, #tpu.memory_space<vmem>>) attributes {dimension_semantics = [#tpu.dimension_semantics<arbitrary>], iteration_bounds = array<i64: 1>, scalar_prefetch = 0 : i64, scratch_operands = 2 : i64, tpu.core_type = #tpu.core_type<tc>, window_params = [{transform_indices = @transform_0, window_bounds = array<i64: 36, 128>}, {pipeline_mode = #tpu.pipeline_mode<synchronous>, transform_indices = @transform_1, window_bounds = array<i64: 8, 36>}, {pipeline_mode = #tpu.pipeline_mode<synchronous>, transform_indices = @transform_2, window_bounds = array<i64: 8, 1>}, {pipeline_mode = #tpu.pipeline_mode<synchronous>, transform_indices = @transform_3, window_bounds = array<i64: 8, 1>}, {pipeline_mode = #tpu.pipeline_mode<synchronous>, transform_indices = @transform_4, window_bounds = array<i64: 8, 128>}]} {
    %c0_i32 = arith.constant 0 : i32
    %0 = arith.cmpi eq, %arg0, %c0_i32 : i32
    %1 = arith.extui %0 : i1 to i32
    %c0_i32_0 = arith.constant 0 : i32
    %2 = arith.cmpi ne, %1, %c0_i32_0 : i32
    scf.if %2 {
      %cst_17 = arith.constant 0.000000e+00 : f32
      %24 = vector.broadcast %cst_17 : f32 to vector<8x1xf32>
      %c0_18 = arith.constant 0 : index
      %c0_19 = arith.constant 0 : index
      %25 = vector.load %arg6[%c0_18, %c0_19] : memref<8x1xf32, #tpu.memory_space<vmem>>, vector<8x1xf32>
      tpu.vector_store %arg6[%c0_18, %c0_19], %24 {strides = array<i32>} : memref<8x1xf32, #tpu.memory_space<vmem>>, vector<8x1xf32>,
      %cst_20 = arith.constant 0.000000e+00 : f32
      %26 = vector.broadcast %cst_20 : f32 to vector<8x1xf32>
      %c0_21 = arith.constant 0 : index
      %c0_22 = arith.constant 0 : index
      %27 = vector.load %arg7[%c0_21, %c0_22] : memref<8x1xf32, #tpu.memory_space<vmem>>, vector<8x1xf32>
      tpu.vector_store %arg7[%c0_21, %c0_22], %26 {strides = array<i32>} : memref<8x1xf32, #tpu.memory_space<vmem>>, vector<8x1xf32>,
    } else {
    }
    %c0 = arith.constant 0 : index
    %c0_1 = arith.constant 0 : index
    %3 = vector.load %arg2[%c0, %c0_1] : memref<8x36xbf16, #tpu.memory_space<vmem>>, vector<8x36xbf16>
    %c0_2 = arith.constant 0 : index
    %c0_3 = arith.constant 0 : index
    %4 = vector.load %arg1[%c0_2, %c0_3] : memref<36x128xbf16, #tpu.memory_space<vmem>>, vector<36x128xbf16>
    %cst = arith.constant dense<0.000000e+00> : vector<8x128xf32>
    %5 = tpu.matmul %3, %4, %cst {dimension_numbers = #tpu.dot_dimension_numbers<[1], [0], [0], [1], [0, 0, 1, 1], [], []>} : vector<8x36xbf16>, vector<36x128xbf16>, vector<8x128xf32> -> vector<8x128xf32>
    %c0_4 = arith.constant 0 : index
    %c0_5 = arith.constant 0 : index
    %6 = vector.load %arg6[%c0_4, %c0_5] : memref<8x1xf32, #tpu.memory_space<vmem>>, vector<8x1xf32>
    %cst_6 = arith.constant dense<0.000000e+00> : vector<8xf32>
    %7 = vector.multi_reduction <add>, %5, %cst_6 [1] : vector<8x128xf32> to vector<8xf32>
    %8 = vector.shape_cast %7 : vector<8xf32> to vector<8x1xf32>
    %9 = arith.addf %6, %8 : vector<8x1xf32>
    %c0_7 = arith.constant 0 : index
    %c0_8 = arith.constant 0 : index
    %10 = vector.load %arg6[%c0_7, %c0_8] : memref<8x1xf32, #tpu.memory_space<vmem>>, vector<8x1xf32>
    tpu.vector_store %arg6[%c0_7, %c0_8], %9 {strides = array<i32>} : memref<8x1xf32, #tpu.memory_space<vmem>>, vector<8x1xf32>,
    %c0_9 = arith.constant 0 : index
    %c0_10 = arith.constant 0 : index
    %11 = vector.load %arg7[%c0_9, %c0_10] : memref<8x1xf32, #tpu.memory_space<vmem>>, vector<8x1xf32>
    %12 = arith.mulf %5, %5 : vector<8x128xf32>
    %cst_11 = arith.constant dense<0.000000e+00> : vector<8xf32>
    %13 = vector.multi_reduction <add>, %12, %cst_11 [1] : vector<8x128xf32> to vector<8xf32>
    %14 = vector.shape_cast %13 : vector<8xf32> to vector<8x1xf32>
    %15 = arith.addf %11, %14 : vector<8x1xf32>
    %c0_12 = arith.constant 0 : index
    %c0_13 = arith.constant 0 : index
    %16 = vector.load %arg7[%c0_12, %c0_13] : memref<8x1xf32, #tpu.memory_space<vmem>>, vector<8x1xf32>
    tpu.vector_store %arg7[%c0_12, %c0_13], %15 {strides = array<i32>} : memref<8x1xf32, #tpu.memory_space<vmem>>, vector<8x1xf32>,
    %c128_i32 = arith.constant 128 : i32
    %17 = arith.muli %arg0, %c128_i32 : i32
    %18 = tpu.assume_multiple %17, 128 : i32
    %c0_14 = arith.constant 0 : index
    %19 = arith.index_cast %18 : i32 to index
    %20 = vector.load %arg5[%c0_14, %19] : memref<8x128xf32, #tpu.memory_space<vmem>>, vector<8x128xf32>
    tpu.vector_store %arg5[%c0_14, %19], %5 {strides = array<i32>} : memref<8x128xf32, #tpu.memory_space<vmem>>, vector<8x128xf32>,
    %c0_i32_15 = arith.constant 0 : i32
    %21 = arith.cmpi eq, %arg0, %c0_i32_15 : i32
    %22 = arith.extui %21 : i1 to i32
    %c0_i32_16 = arith.constant 0 : i32
    %23 = arith.cmpi ne, %22, %c0_i32_16 : i32
    scf.if %23 {
      %c0_17 = arith.constant 0 : index
      %c0_18 = arith.constant 0 : index
      %24 = vector.load %arg6[%c0_17, %c0_18] : memref<8x1xf32, #tpu.memory_space<vmem>>, vector<8x1xf32>
      %cst_19 = arith.constant 7.812500e-03 : f32
      %25 = vector.broadcast %cst_19 : f32 to vector<8x1xf32>
      %26 = arith.mulf %24, %25 : vector<8x1xf32>
      %c0_20 = arith.constant 0 : index
      %c0_21 = arith.constant 0 : index
      %27 = vector.load %arg7[%c0_20, %c0_21] : memref<8x1xf32, #tpu.memory_space<vmem>>, vector<8x1xf32>
      %cst_22 = arith.constant 7.812500e-03 : f32
      %28 = vector.broadcast %cst_22 : f32 to vector<8x1xf32>
      %29 = arith.mulf %27, %28 : vector<8x1xf32>
      %30 = arith.mulf %26, %26 : vector<8x1xf32>
      %31 = arith.subf %29, %30 : vector<8x1xf32>
      %c0_23 = arith.constant 0 : index
      %c0_24 = arith.constant 0 : index
      %32 = vector.load %arg3[%c0_23, %c0_24] : memref<8x1xf32, #tpu.memory_space<vmem>>, vector<8x1xf32>
      %cst_25 = arith.constant 9.99999974E-6 : f32
      %33 = vector.broadcast %cst_25 : f32 to vector<8x1xf32>
      %34 = arith.addf %31, %33 : vector<8x1xf32>
      %35 = math.rsqrt %34 : vector<8x1xf32>
      %36 = arith.mulf %32, %35 : vector<8x1xf32>
      %c0_26 = arith.constant 0 : index
      %c0_27 = arith.constant 0 : index
      %37 = vector.load %arg4[%c0_26, %c0_27] : memref<8x1xf32, #tpu.memory_space<vmem>>, vector<8x1xf32>
      %38 = arith.mulf %26, %36 : vector<8x1xf32>
      %39 = arith.subf %37, %38 : vector<8x1xf32>
      %c0_28 = arith.constant 0 : index
      %c0_29 = arith.constant 0 : index
      %40 = vector.load %arg5[%c0_28, %c0_29] : memref<8x128xf32, #tpu.memory_space<vmem>>, vector<8x128xf32>
      %41 = vector.broadcast %36 : vector<8x1xf32> to vector<8x128xf32>
      %42 = arith.mulf %40, %41 : vector<8x128xf32>
      %43 = vector.broadcast %39 : vector<8x1xf32> to vector<8x128xf32>
      %44 = arith.addf %42, %43 : vector<8x128xf32>
      %cst_30 = arith.constant 0.000000e+00 : f32
      %45 = vector.broadcast %cst_30 : f32 to vector<8x128xf32>
      %46 = arith.maximumf %44, %45 : vector<8x128xf32>
      %c0_31 = arith.constant 0 : index
      %c0_32 = arith.constant 0 : index
      %47 = vector.load %arg5[%c0_31, %c0_32] : memref<8x128xf32, #tpu.memory_space<vmem>>, vector<8x128xf32>
      tpu.vector_store %arg5[%c0_31, %c0_32], %46 {strides = array<i32>} : memref<8x128xf32, #tpu.memory_space<vmem>>, vector<8x128xf32>,
    } else {
    }
    return
  }
  func.func @transform_0(%arg0: i32) -> (i32, i32) {
    %c0_i32 = arith.constant 0 : i32
    %c0_i32_0 = arith.constant 0 : i32
    return %c0_i32, %arg0 : i32, i32
  }
  func.func @transform_1(%arg0: i32) -> (i32, i32) {
    %c0_i32 = arith.constant 0 : i32
    %c0_i32_0 = arith.constant 0 : i32
    %c0_i32_1 = arith.constant 0 : i32
    return %c0_i32, %c0_i32_0 : i32, i32
  }
  func.func @transform_2(%arg0: i32) -> (i32, i32) {
    %c0_i32 = arith.constant 0 : i32
    %c0_i32_0 = arith.constant 0 : i32
    %c0_i32_1 = arith.constant 0 : i32
    return %c0_i32, %c0_i32_0 : i32, i32
  }
  func.func @transform_3(%arg0: i32) -> (i32, i32) {
    %c0_i32 = arith.constant 0 : i32
    %c0_i32_0 = arith.constant 0 : i32
    %c0_i32_1 = arith.constant 0 : i32
    return %c0_i32, %c0_i32_0 : i32, i32
  }
  func.func @transform_4(%arg0: i32) -> (i32, i32) {
    %c0_i32 = arith.constant 0 : i32
    %c0_i32_0 = arith.constant 0 : i32
    %c0_i32_1 = arith.constant 0 : i32
    return %c0_i32, %c0_i32_0 : i32, i32
  }
}

module attributes {stable_mosaic.version = 11 : i64} {
  func.func @_conv_bn_relu_kernel(%arg0: i32, %arg1: memref<72x128xbf16, #tpu.memory_space<vmem>>, %arg2: memref<16x72xbf16, #tpu.memory_space<vmem>>, %arg3: memref<16x1xf32, #tpu.memory_space<vmem>>, %arg4: memref<16x1xf32, #tpu.memory_space<vmem>>, %arg5: memref<16x128xf32, #tpu.memory_space<vmem>>, %arg6: memref<16x1xf32, #tpu.memory_space<vmem>>, %arg7: memref<16x1xf32, #tpu.memory_space<vmem>>) attributes {dimension_semantics = [#tpu.dimension_semantics<arbitrary>], iteration_bounds = array<i64: 1>, scalar_prefetch = 0 : i64, scratch_operands = 2 : i64, tpu.core_type = #tpu.core_type<tc>, window_params = [{transform_indices = @transform_0, window_bounds = array<i64: 72, 128>}, {pipeline_mode = #tpu.pipeline_mode<synchronous>, transform_indices = @transform_1, window_bounds = array<i64: 16, 72>}, {pipeline_mode = #tpu.pipeline_mode<synchronous>, transform_indices = @transform_2, window_bounds = array<i64: 16, 1>}, {pipeline_mode = #tpu.pipeline_mode<synchronous>, transform_indices = @transform_3, window_bounds = array<i64: 16, 1>}, {pipeline_mode = #tpu.pipeline_mode<synchronous>, transform_indices = @transform_4, window_bounds = array<i64: 16, 128>}]} {
    %c0_i32 = arith.constant 0 : i32
    %0 = arith.cmpi eq, %arg0, %c0_i32 : i32
    %1 = arith.extui %0 : i1 to i32
    %c0_i32_0 = arith.constant 0 : i32
    %2 = arith.cmpi ne, %1, %c0_i32_0 : i32
    scf.if %2 {
      %cst_17 = arith.constant 0.000000e+00 : f32
      %24 = vector.broadcast %cst_17 : f32 to vector<16x1xf32>
      %c0_18 = arith.constant 0 : index
      %c0_19 = arith.constant 0 : index
      %25 = vector.load %arg6[%c0_18, %c0_19] : memref<16x1xf32, #tpu.memory_space<vmem>>, vector<16x1xf32>
      tpu.vector_store %arg6[%c0_18, %c0_19], %24 {strides = array<i32>} : memref<16x1xf32, #tpu.memory_space<vmem>>, vector<16x1xf32>,
      %cst_20 = arith.constant 0.000000e+00 : f32
      %26 = vector.broadcast %cst_20 : f32 to vector<16x1xf32>
      %c0_21 = arith.constant 0 : index
      %c0_22 = arith.constant 0 : index
      %27 = vector.load %arg7[%c0_21, %c0_22] : memref<16x1xf32, #tpu.memory_space<vmem>>, vector<16x1xf32>
      tpu.vector_store %arg7[%c0_21, %c0_22], %26 {strides = array<i32>} : memref<16x1xf32, #tpu.memory_space<vmem>>, vector<16x1xf32>,
    } else {
    }
    %c0 = arith.constant 0 : index
    %c0_1 = arith.constant 0 : index
    %3 = vector.load %arg2[%c0, %c0_1] : memref<16x72xbf16, #tpu.memory_space<vmem>>, vector<16x72xbf16>
    %c0_2 = arith.constant 0 : index
    %c0_3 = arith.constant 0 : index
    %4 = vector.load %arg1[%c0_2, %c0_3] : memref<72x128xbf16, #tpu.memory_space<vmem>>, vector<72x128xbf16>
    %cst = arith.constant dense<0.000000e+00> : vector<16x128xf32>
    %5 = tpu.matmul %3, %4, %cst {dimension_numbers = #tpu.dot_dimension_numbers<[1], [0], [0], [1], [0, 0, 1, 1], [], []>} : vector<16x72xbf16>, vector<72x128xbf16>, vector<16x128xf32> -> vector<16x128xf32>
    %c0_4 = arith.constant 0 : index
    %c0_5 = arith.constant 0 : index
    %6 = vector.load %arg6[%c0_4, %c0_5] : memref<16x1xf32, #tpu.memory_space<vmem>>, vector<16x1xf32>
    %cst_6 = arith.constant dense<0.000000e+00> : vector<16xf32>
    %7 = vector.multi_reduction <add>, %5, %cst_6 [1] : vector<16x128xf32> to vector<16xf32>
    %8 = vector.shape_cast %7 : vector<16xf32> to vector<16x1xf32>
    %9 = arith.addf %6, %8 : vector<16x1xf32>
    %c0_7 = arith.constant 0 : index
    %c0_8 = arith.constant 0 : index
    %10 = vector.load %arg6[%c0_7, %c0_8] : memref<16x1xf32, #tpu.memory_space<vmem>>, vector<16x1xf32>
    tpu.vector_store %arg6[%c0_7, %c0_8], %9 {strides = array<i32>} : memref<16x1xf32, #tpu.memory_space<vmem>>, vector<16x1xf32>,
    %c0_9 = arith.constant 0 : index
    %c0_10 = arith.constant 0 : index
    %11 = vector.load %arg7[%c0_9, %c0_10] : memref<16x1xf32, #tpu.memory_space<vmem>>, vector<16x1xf32>
    %12 = arith.mulf %5, %5 : vector<16x128xf32>
    %cst_11 = arith.constant dense<0.000000e+00> : vector<16xf32>
    %13 = vector.multi_reduction <add>, %12, %cst_11 [1] : vector<16x128xf32> to vector<16xf32>
    %14 = vector.shape_cast %13 : vector<16xf32> to vector<16x1xf32>
    %15 = arith.addf %11, %14 : vector<16x1xf32>
    %c0_12 = arith.constant 0 : index
    %c0_13 = arith.constant 0 : index
    %16 = vector.load %arg7[%c0_12, %c0_13] : memref<16x1xf32, #tpu.memory_space<vmem>>, vector<16x1xf32>
    tpu.vector_store %arg7[%c0_12, %c0_13], %15 {strides = array<i32>} : memref<16x1xf32, #tpu.memory_space<vmem>>, vector<16x1xf32>,
    %c128_i32 = arith.constant 128 : i32
    %17 = arith.muli %arg0, %c128_i32 : i32
    %18 = tpu.assume_multiple %17, 128 : i32
    %c0_14 = arith.constant 0 : index
    %19 = arith.index_cast %18 : i32 to index
    %20 = vector.load %arg5[%c0_14, %19] : memref<16x128xf32, #tpu.memory_space<vmem>>, vector<16x128xf32>
    tpu.vector_store %arg5[%c0_14, %19], %5 {strides = array<i32>} : memref<16x128xf32, #tpu.memory_space<vmem>>, vector<16x128xf32>,
    %c0_i32_15 = arith.constant 0 : i32
    %21 = arith.cmpi eq, %arg0, %c0_i32_15 : i32
    %22 = arith.extui %21 : i1 to i32
    %c0_i32_16 = arith.constant 0 : i32
    %23 = arith.cmpi ne, %22, %c0_i32_16 : i32
    scf.if %23 {
      %c0_17 = arith.constant 0 : index
      %c0_18 = arith.constant 0 : index
      %24 = vector.load %arg6[%c0_17, %c0_18] : memref<16x1xf32, #tpu.memory_space<vmem>>, vector<16x1xf32>
      %cst_19 = arith.constant 3.125000e-02 : f32
      %25 = vector.broadcast %cst_19 : f32 to vector<16x1xf32>
      %26 = arith.mulf %24, %25 : vector<16x1xf32>
      %c0_20 = arith.constant 0 : index
      %c0_21 = arith.constant 0 : index
      %27 = vector.load %arg7[%c0_20, %c0_21] : memref<16x1xf32, #tpu.memory_space<vmem>>, vector<16x1xf32>
      %cst_22 = arith.constant 3.125000e-02 : f32
      %28 = vector.broadcast %cst_22 : f32 to vector<16x1xf32>
      %29 = arith.mulf %27, %28 : vector<16x1xf32>
      %30 = arith.mulf %26, %26 : vector<16x1xf32>
      %31 = arith.subf %29, %30 : vector<16x1xf32>
      %c0_23 = arith.constant 0 : index
      %c0_24 = arith.constant 0 : index
      %32 = vector.load %arg3[%c0_23, %c0_24] : memref<16x1xf32, #tpu.memory_space<vmem>>, vector<16x1xf32>
      %cst_25 = arith.constant 9.99999974E-6 : f32
      %33 = vector.broadcast %cst_25 : f32 to vector<16x1xf32>
      %34 = arith.addf %31, %33 : vector<16x1xf32>
      %35 = math.rsqrt %34 : vector<16x1xf32>
      %36 = arith.mulf %32, %35 : vector<16x1xf32>
      %c0_26 = arith.constant 0 : index
      %c0_27 = arith.constant 0 : index
      %37 = vector.load %arg4[%c0_26, %c0_27] : memref<16x1xf32, #tpu.memory_space<vmem>>, vector<16x1xf32>
      %38 = arith.mulf %26, %36 : vector<16x1xf32>
      %39 = arith.subf %37, %38 : vector<16x1xf32>
      %c0_28 = arith.constant 0 : index
      %c0_29 = arith.constant 0 : index
      %40 = vector.load %arg5[%c0_28, %c0_29] : memref<16x128xf32, #tpu.memory_space<vmem>>, vector<16x128xf32>
      %41 = vector.broadcast %36 : vector<16x1xf32> to vector<16x128xf32>
      %42 = arith.mulf %40, %41 : vector<16x128xf32>
      %43 = vector.broadcast %39 : vector<16x1xf32> to vector<16x128xf32>
      %44 = arith.addf %42, %43 : vector<16x128xf32>
      %cst_30 = arith.constant 0.000000e+00 : f32
      %45 = vector.broadcast %cst_30 : f32 to vector<16x128xf32>
      %46 = arith.maximumf %44, %45 : vector<16x128xf32>
      %c0_31 = arith.constant 0 : index
      %c0_32 = arith.constant 0 : index
      %47 = vector.load %arg5[%c0_31, %c0_32] : memref<16x128xf32, #tpu.memory_space<vmem>>, vector<16x128xf32>
      tpu.vector_store %arg5[%c0_31, %c0_32], %46 {strides = array<i32>} : memref<16x128xf32, #tpu.memory_space<vmem>>, vector<16x128xf32>,
    } else {
    }
    return
  }
  func.func @transform_0(%arg0: i32) -> (i32, i32) {
    %c0_i32 = arith.constant 0 : i32
    %c0_i32_0 = arith.constant 0 : i32
    return %c0_i32, %arg0 : i32, i32
  }
  func.func @transform_1(%arg0: i32) -> (i32, i32) {
    %c0_i32 = arith.constant 0 : i32
    %c0_i32_0 = arith.constant 0 : i32
    %c0_i32_1 = arith.constant 0 : i32
    return %c0_i32, %c0_i32_0 : i32, i32
  }
  func.func @transform_2(%arg0: i32) -> (i32, i32) {
    %c0_i32 = arith.constant 0 : i32
    %c0_i32_0 = arith.constant 0 : i32
    %c0_i32_1 = arith.constant 0 : i32
    return %c0_i32, %c0_i32_0 : i32, i32
  }
  func.func @transform_3(%arg0: i32) -> (i32, i32) {
    %c0_i32 = arith.constant 0 : i32
    %c0_i32_0 = arith.constant 0 : i32
    %c0_i32_1 = arith.constant 0 : i32
    return %c0_i32, %c0_i32_0 : i32, i32
  }
  func.func @transform_4(%arg0: i32) -> (i32, i32) {
    %c0_i32 = arith.constant 0 : i32
    %c0_i32_0 = arith.constant 0 : i32
    %c0_i32_1 = arith.constant 0 : i32
    return %c0_i32, %c0_i32_0 : i32, i32
  }
}

module attributes {stable_mosaic.version = 11 : i64} {
  func.func @_conv_bn_relu_kernel(%arg0: i32, %arg1: memref<144x128xbf16, #tpu.memory_space<vmem>>, %arg2: memref<8x144xbf16, #tpu.memory_space<vmem>>, %arg3: memref<8x1xf32, #tpu.memory_space<vmem>>, %arg4: memref<8x1xf32, #tpu.memory_space<vmem>>, %arg5: memref<8x128xf32, #tpu.memory_space<vmem>>, %arg6: memref<8x1xf32, #tpu.memory_space<vmem>>, %arg7: memref<8x1xf32, #tpu.memory_space<vmem>>) attributes {dimension_semantics = [#tpu.dimension_semantics<arbitrary>], iteration_bounds = array<i64: 1>, scalar_prefetch = 0 : i64, scratch_operands = 2 : i64, tpu.core_type = #tpu.core_type<tc>, window_params = [{transform_indices = @transform_0, window_bounds = array<i64: 144, 128>}, {pipeline_mode = #tpu.pipeline_mode<synchronous>, transform_indices = @transform_1, window_bounds = array<i64: 8, 144>}, {pipeline_mode = #tpu.pipeline_mode<synchronous>, transform_indices = @transform_2, window_bounds = array<i64: 8, 1>}, {pipeline_mode = #tpu.pipeline_mode<synchronous>, transform_indices = @transform_3, window_bounds = array<i64: 8, 1>}, {pipeline_mode = #tpu.pipeline_mode<synchronous>, transform_indices = @transform_4, window_bounds = array<i64: 8, 128>}]} {
    %c0_i32 = arith.constant 0 : i32
    %0 = arith.cmpi eq, %arg0, %c0_i32 : i32
    %1 = arith.extui %0 : i1 to i32
    %c0_i32_0 = arith.constant 0 : i32
    %2 = arith.cmpi ne, %1, %c0_i32_0 : i32
    scf.if %2 {
      %cst_17 = arith.constant 0.000000e+00 : f32
      %24 = vector.broadcast %cst_17 : f32 to vector<8x1xf32>
      %c0_18 = arith.constant 0 : index
      %c0_19 = arith.constant 0 : index
      %25 = vector.load %arg6[%c0_18, %c0_19] : memref<8x1xf32, #tpu.memory_space<vmem>>, vector<8x1xf32>
      tpu.vector_store %arg6[%c0_18, %c0_19], %24 {strides = array<i32>} : memref<8x1xf32, #tpu.memory_space<vmem>>, vector<8x1xf32>,
      %cst_20 = arith.constant 0.000000e+00 : f32
      %26 = vector.broadcast %cst_20 : f32 to vector<8x1xf32>
      %c0_21 = arith.constant 0 : index
      %c0_22 = arith.constant 0 : index
      %27 = vector.load %arg7[%c0_21, %c0_22] : memref<8x1xf32, #tpu.memory_space<vmem>>, vector<8x1xf32>
      tpu.vector_store %arg7[%c0_21, %c0_22], %26 {strides = array<i32>} : memref<8x1xf32, #tpu.memory_space<vmem>>, vector<8x1xf32>,
    } else {
    }
    %c0 = arith.constant 0 : index
    %c0_1 = arith.constant 0 : index
    %3 = vector.load %arg2[%c0, %c0_1] : memref<8x144xbf16, #tpu.memory_space<vmem>>, vector<8x144xbf16>
    %c0_2 = arith.constant 0 : index
    %c0_3 = arith.constant 0 : index
    %4 = vector.load %arg1[%c0_2, %c0_3] : memref<144x128xbf16, #tpu.memory_space<vmem>>, vector<144x128xbf16>
    %cst = arith.constant dense<0.000000e+00> : vector<8x128xf32>
    %5 = tpu.matmul %3, %4, %cst {dimension_numbers = #tpu.dot_dimension_numbers<[1], [0], [0], [1], [0, 0, 1, 1], [], []>} : vector<8x144xbf16>, vector<144x128xbf16>, vector<8x128xf32> -> vector<8x128xf32>
    %c0_4 = arith.constant 0 : index
    %c0_5 = arith.constant 0 : index
    %6 = vector.load %arg6[%c0_4, %c0_5] : memref<8x1xf32, #tpu.memory_space<vmem>>, vector<8x1xf32>
    %cst_6 = arith.constant dense<0.000000e+00> : vector<8xf32>
    %7 = vector.multi_reduction <add>, %5, %cst_6 [1] : vector<8x128xf32> to vector<8xf32>
    %8 = vector.shape_cast %7 : vector<8xf32> to vector<8x1xf32>
    %9 = arith.addf %6, %8 : vector<8x1xf32>
    %c0_7 = arith.constant 0 : index
    %c0_8 = arith.constant 0 : index
    %10 = vector.load %arg6[%c0_7, %c0_8] : memref<8x1xf32, #tpu.memory_space<vmem>>, vector<8x1xf32>
    tpu.vector_store %arg6[%c0_7, %c0_8], %9 {strides = array<i32>} : memref<8x1xf32, #tpu.memory_space<vmem>>, vector<8x1xf32>,
    %c0_9 = arith.constant 0 : index
    %c0_10 = arith.constant 0 : index
    %11 = vector.load %arg7[%c0_9, %c0_10] : memref<8x1xf32, #tpu.memory_space<vmem>>, vector<8x1xf32>
    %12 = arith.mulf %5, %5 : vector<8x128xf32>
    %cst_11 = arith.constant dense<0.000000e+00> : vector<8xf32>
    %13 = vector.multi_reduction <add>, %12, %cst_11 [1] : vector<8x128xf32> to vector<8xf32>
    %14 = vector.shape_cast %13 : vector<8xf32> to vector<8x1xf32>
    %15 = arith.addf %11, %14 : vector<8x1xf32>
    %c0_12 = arith.constant 0 : index
    %c0_13 = arith.constant 0 : index
    %16 = vector.load %arg7[%c0_12, %c0_13] : memref<8x1xf32, #tpu.memory_space<vmem>>, vector<8x1xf32>
    tpu.vector_store %arg7[%c0_12, %c0_13], %15 {strides = array<i32>} : memref<8x1xf32, #tpu.memory_space<vmem>>, vector<8x1xf32>,
    %c128_i32 = arith.constant 128 : i32
    %17 = arith.muli %arg0, %c128_i32 : i32
    %18 = tpu.assume_multiple %17, 128 : i32
    %c0_14 = arith.constant 0 : index
    %19 = arith.index_cast %18 : i32 to index
    %20 = vector.load %arg5[%c0_14, %19] : memref<8x128xf32, #tpu.memory_space<vmem>>, vector<8x128xf32>
    tpu.vector_store %arg5[%c0_14, %19], %5 {strides = array<i32>} : memref<8x128xf32, #tpu.memory_space<vmem>>, vector<8x128xf32>,
    %c0_i32_15 = arith.constant 0 : i32
    %21 = arith.cmpi eq, %arg0, %c0_i32_15 : i32
    %22 = arith.extui %21 : i1 to i32
    %c0_i32_16 = arith.constant 0 : i32
    %23 = arith.cmpi ne, %22, %c0_i32_16 : i32
    scf.if %23 {
      %c0_17 = arith.constant 0 : index
      %c0_18 = arith.constant 0 : index
      %24 = vector.load %arg6[%c0_17, %c0_18] : memref<8x1xf32, #tpu.memory_space<vmem>>, vector<8x1xf32>
      %cst_19 = arith.constant 7.812500e-03 : f32
      %25 = vector.broadcast %cst_19 : f32 to vector<8x1xf32>
      %26 = arith.mulf %24, %25 : vector<8x1xf32>
      %c0_20 = arith.constant 0 : index
      %c0_21 = arith.constant 0 : index
      %27 = vector.load %arg7[%c0_20, %c0_21] : memref<8x1xf32, #tpu.memory_space<vmem>>, vector<8x1xf32>
      %cst_22 = arith.constant 7.812500e-03 : f32
      %28 = vector.broadcast %cst_22 : f32 to vector<8x1xf32>
      %29 = arith.mulf %27, %28 : vector<8x1xf32>
      %30 = arith.mulf %26, %26 : vector<8x1xf32>
      %31 = arith.subf %29, %30 : vector<8x1xf32>
      %c0_23 = arith.constant 0 : index
      %c0_24 = arith.constant 0 : index
      %32 = vector.load %arg3[%c0_23, %c0_24] : memref<8x1xf32, #tpu.memory_space<vmem>>, vector<8x1xf32>
      %cst_25 = arith.constant 9.99999974E-6 : f32
      %33 = vector.broadcast %cst_25 : f32 to vector<8x1xf32>
      %34 = arith.addf %31, %33 : vector<8x1xf32>
      %35 = math.rsqrt %34 : vector<8x1xf32>
      %36 = arith.mulf %32, %35 : vector<8x1xf32>
      %c0_26 = arith.constant 0 : index
      %c0_27 = arith.constant 0 : index
      %37 = vector.load %arg4[%c0_26, %c0_27] : memref<8x1xf32, #tpu.memory_space<vmem>>, vector<8x1xf32>
      %38 = arith.mulf %26, %36 : vector<8x1xf32>
      %39 = arith.subf %37, %38 : vector<8x1xf32>
      %c0_28 = arith.constant 0 : index
      %c0_29 = arith.constant 0 : index
      %40 = vector.load %arg5[%c0_28, %c0_29] : memref<8x128xf32, #tpu.memory_space<vmem>>, vector<8x128xf32>
      %41 = vector.broadcast %36 : vector<8x1xf32> to vector<8x128xf32>
      %42 = arith.mulf %40, %41 : vector<8x128xf32>
      %43 = vector.broadcast %39 : vector<8x1xf32> to vector<8x128xf32>
      %44 = arith.addf %42, %43 : vector<8x128xf32>
      %cst_30 = arith.constant 0.000000e+00 : f32
      %45 = vector.broadcast %cst_30 : f32 to vector<8x128xf32>
      %46 = arith.maximumf %44, %45 : vector<8x128xf32>
      %c0_31 = arith.constant 0 : index
      %c0_32 = arith.constant 0 : index
      %47 = vector.load %arg5[%c0_31, %c0_32] : memref<8x128xf32, #tpu.memory_space<vmem>>, vector<8x128xf32>
      tpu.vector_store %arg5[%c0_31, %c0_32], %46 {strides = array<i32>} : memref<8x128xf32, #tpu.memory_space<vmem>>, vector<8x128xf32>,
    } else {
    }
    return
  }
  func.func @transform_0(%arg0: i32) -> (i32, i32) {
    %c0_i32 = arith.constant 0 : i32
    %c0_i32_0 = arith.constant 0 : i32
    return %c0_i32, %arg0 : i32, i32
  }
  func.func @transform_1(%arg0: i32) -> (i32, i32) {
    %c0_i32 = arith.constant 0 : i32
    %c0_i32_0 = arith.constant 0 : i32
    %c0_i32_1 = arith.constant 0 : i32
    return %c0_i32, %c0_i32_0 : i32, i32
  }
  func.func @transform_2(%arg0: i32) -> (i32, i32) {
    %c0_i32 = arith.constant 0 : i32
    %c0_i32_0 = arith.constant 0 : i32
    %c0_i32_1 = arith.constant 0 : i32
    return %c0_i32, %c0_i32_0 : i32, i32
  }
  func.func @transform_3(%arg0: i32) -> (i32, i32) {
    %c0_i32 = arith.constant 0 : i32
    %c0_i32_0 = arith.constant 0 : i32
    %c0_i32_1 = arith.constant 0 : i32
    return %c0_i32, %c0_i32_0 : i32, i32
  }
  func.func @transform_4(%arg0: i32) -> (i32, i32) {
    %c0_i32 = arith.constant 0 : i32
    %c0_i32_0 = arith.constant 0 : i32
    %c0_i32_1 = arith.constant 0 : i32
    return %c0_i32, %c0_i32_0 : i32, i32
  }
}

module attributes {stable_mosaic.version = 11 : i64} {
  func.func @_conv_bias_sigmoid_kernel(%arg0: i32, %arg1: memref<72x256xbf16, #tpu.memory_space<vmem>>, %arg2: memref<8x72xbf16, #tpu.memory_space<vmem>>, %arg3: memref<8x1xf32, #tpu.memory_space<vmem>>, %arg4: memref<8x256xf32, #tpu.memory_space<vmem>>) attributes {dimension_semantics = [#tpu.dimension_semantics<parallel>], iteration_bounds = array<i64: 2>, scalar_prefetch = 0 : i64, scratch_operands = 0 : i64, tpu.core_type = #tpu.core_type<tc>, window_params = [{transform_indices = @transform_0, window_bounds = array<i64: 72, 256>}, {pipeline_mode = #tpu.pipeline_mode<synchronous>, transform_indices = @transform_1, window_bounds = array<i64: 8, 72>}, {pipeline_mode = #tpu.pipeline_mode<synchronous>, transform_indices = @transform_2, window_bounds = array<i64: 8, 1>}, {transform_indices = @transform_3, window_bounds = array<i64: 8, 256>}]} {
    %c0 = arith.constant 0 : index
    %c0_0 = arith.constant 0 : index
    %0 = vector.load %arg2[%c0, %c0_0] : memref<8x72xbf16, #tpu.memory_space<vmem>>, vector<8x72xbf16>
    %c0_1 = arith.constant 0 : index
    %c0_2 = arith.constant 0 : index
    %1 = vector.load %arg1[%c0_1, %c0_2] : memref<72x256xbf16, #tpu.memory_space<vmem>>, vector<72x256xbf16>
    %cst = arith.constant dense<0.000000e+00> : vector<8x256xf32>
    %2 = tpu.matmul %0, %1, %cst {dimension_numbers = #tpu.dot_dimension_numbers<[1], [0], [0], [1], [0, 0, 1, 1], [], []>} : vector<8x72xbf16>, vector<72x256xbf16>, vector<8x256xf32> -> vector<8x256xf32>
    %c0_3 = arith.constant 0 : index
    %c0_4 = arith.constant 0 : index
    %3 = vector.load %arg3[%c0_3, %c0_4] : memref<8x1xf32, #tpu.memory_space<vmem>>, vector<8x1xf32>
    %4 = vector.broadcast %3 : vector<8x1xf32> to vector<8x256xf32>
    %5 = arith.addf %2, %4 : vector<8x256xf32>
    %cst_5 = arith.constant 0.000000e+00 : f32
    %6 = vector.broadcast %cst_5 : f32 to vector<8x256xf32>
    %7 = arith.subf %6, %5 : vector<8x256xf32>
    %8 = math.exp %7 : vector<8x256xf32>
    %cst_6 = arith.constant 1.000000e+00 : f32
    %9 = vector.broadcast %cst_6 : f32 to vector<8x256xf32>
    %10 = arith.addf %9, %8 : vector<8x256xf32>
    %11 = tpu.reciprocal %10 {approx = true} : vector<8x256xf32> -> vector<8x256xf32>
    %c0_7 = arith.constant 0 : index
    %c0_8 = arith.constant 0 : index
    %12 = vector.load %arg4[%c0_7, %c0_8] : memref<8x256xf32, #tpu.memory_space<vmem>>, vector<8x256xf32>
    tpu.vector_store %arg4[%c0_7, %c0_8], %11 {strides = array<i32>} : memref<8x256xf32, #tpu.memory_space<vmem>>, vector<8x256xf32>,
    return
  }
  func.func @transform_0(%arg0: i32) -> (i32, i32) {
    %c0_i32 = arith.constant 0 : i32
    %c0_i32_0 = arith.constant 0 : i32
    return %c0_i32, %arg0 : i32, i32
  }
  func.func @transform_1(%arg0: i32) -> (i32, i32) {
    %c0_i32 = arith.constant 0 : i32
    %c0_i32_0 = arith.constant 0 : i32
    %c0_i32_1 = arith.constant 0 : i32
    return %c0_i32, %c0_i32_0 : i32, i32
  }
  func.func @transform_2(%arg0: i32) -> (i32, i32) {
    %c0_i32 = arith.constant 0 : i32
    %c0_i32_0 = arith.constant 0 : i32
    %c0_i32_1 = arith.constant 0 : i32
    return %c0_i32, %c0_i32_0 : i32, i32
  }
  func.func @transform_3(%arg0: i32) -> (i32, i32) {
    %c0_i32 = arith.constant 0 : i32
    %c0_i32_0 = arith.constant 0 : i32
    return %c0_i32, %arg0 : i32, i32
  }
}

</mosaic_0001>

<llo_original>
// kernel: autoencoder_forward.4
$region0: #{autoencoder_forward.4}
  #allocation0 [shape = 'u32[]', space=smem, size = 0x4, offset = 0x4, fixed_abs, tag = 'smem constant byte address 0x4 - core index']
  #allocation1 [shape = 'u32[72,128]{1,0:T(1,128)}', space=vmem, size = 0x9000, scoped, tag = 'internal scratch']
  #allocation2 [shape = 'f32[8,1]{1,0:T(8,128)}', space=vmem, size = 0x1000, scoped, tag = 'scratch operand']
  #allocation3 [shape = 'f32[8,1]{1,0:T(8,128)}', space=vmem, size = 0x1000, scoped, tag = 'scratch operand']
  %s0 = inlined_call_operand.vmem [shape: bf16[36,128], index: 0, kind: input, shape index: {}]
  %s1 = inlined_call_operand.vmem [shape: bf16[8,36], index: 1, kind: input, shape index: {}]
  %s2 = inlined_call_operand.vmem [shape: f32[8,1], index: 2, kind: input, shape index: {}]
  %s3 = inlined_call_operand.vmem [shape: f32[8,1], index: 3, kind: input, shape index: {}]
  %s4 = inlined_call_operand.vmem [shape: f32[8,128], index: 4, kind: output, shape index: {}]
  %s5 = sld [smem:[#allocation0]]
  $region34: #{autoencoder_forward.4} parent=0
    _
  %s7 = ssub.s32 1, %s5
  %s8 = scalar_select 0, %s7, %s5
  // Predicated region
  $region2: #{autoencoder_forward.4} parent=0 // pred_check
    _
  $region3: #{autoencoder_forward.4} parent=0 // pred_check_branch
    %10 = sbr.rel (0) target = $region5
  $region4: #{autoencoder_forward.4} parent=0 // pred_region
    _
  $region5: #{autoencoder_forward.4} parent=0 // pred_fallthru
    _
  // Predicated region
  $region6: #{autoencoder_forward.4} parent=0 // pred_check
    _
  $region7: #{autoencoder_forward.4} parent=0 // pred_check_branch
    %12 = sbr.rel (0) target = $region9
  $region8: #{autoencoder_forward.4} parent=0 // pred_region
    _
  $region9: #{autoencoder_forward.4} parent=0 // pred_fallthru
    _
  // Predicated region
  $region10: #{autoencoder_forward.4} parent=0 // pred_check
    _
  $region11: #{autoencoder_forward.4} parent=0 // pred_check_branch
    %14 = sbr.rel (0) target = $region13
  $region12: #{autoencoder_forward.4} parent=0 // pred_region
    _
  $region13: #{autoencoder_forward.4} parent=0 // pred_fallthru
    _
  // Predicated region
  $region14: #{autoencoder_forward.4} parent=0 // pred_check
    _
  $region15: #{autoencoder_forward.4} parent=0 // pred_check_branch
    %16 = sbr.rel (0) target = $region17
  $region16: #{autoencoder_forward.4} parent=0 // pred_region
    _
  $region17: #{autoencoder_forward.4} parent=0 // pred_fallthru
    _
  %p18 = scmp.eq.s32.totalorder 0, 0
  // Predicated region
  $region18: #{autoencoder_forward.4} parent=0 // pred_check
    %p19 = pneg %p18
  $region19: #{autoencoder_forward.4} parent=0 // pred_check_branch
    %21 = sbr.rel (%p19) target = $region21
  $region20: #{autoencoder_forward.4} parent=0 // pred_region
    %vm22 = vcmask 7168
    %23 = vst.msk [vmem:[#allocation2] sm:$0xff] %vm22, 0.0
    %24 = vst.msk [vmem:[#allocation3] sm:$0xff] %vm22, 0.0
  $region21: #{autoencoder_forward.4} parent=0 // pred_fallthru
    _
  %v25 = vld [vmem:[%s1] sm:$0xf]
  %v26 = vld [vmem:[%s0] sm:$0xf]
  %v27 = vld [vmem:[%s0 + $0x4] sm:$0xf]
  %v28 = vld [vmem:[%s0 + $0x8] sm:$0xf]
  %v29 = vld [vmem:[%s0 + $0xc] sm:$0xf]
  %v30 = vld [vmem:[%s0 + $0x10] sm:$0x3]
  %v36 = vunpack.c.l.b16 %v26
  %v37 = vunpack.c.l.b16 %v27
  %v38 = vunpack.c.l.b16 %v28
  %v39 = vunpack.c.l.b16 %v29
  %v40 = vunpack.c.l.b16 %v30
  %v41 = vpack.c.b16 %v37, %v36
  %v42 = vpack.c.b16 %v39, %v38
  %v43 = vpack.c.b16 %v40, %v40
  %vm46 = vcmask 293888
  %v48 = vsel %vm46, %v25, 0
  %vm50 = vcmask 1041408
  %v52 = vsel %vm50, %v43, 0
  %54 = vmatpush.bf16.msra.mxu0 0
  %55 = vmatpush.bf16.msra.mxu0 0
  %56 = vmatpush.bf16.msra.mxu0 0
  %57 = vmatpush.bf16.msra.mxu0 0
  %58 = vmatpush.bf16.msra.mxu0 0
  %59 = vmatpush.bf16.msra.mxu0 %v52
  %60 = vmatpush.bf16.msra.mxu0 %v42
  %61 = vmatpush.bf16.msra.mxu0 %v41
  %62 = vmatmul.bf16.gmra.mxu0 %v48
  %v63 = vpop.f32.mrf.mxu0
  %v64 = vadd.f32 0.0, %v63
  %v65 = vpop.f32.mrf.mxu0
  %66 = vdwg.mxu0
  %v67 = vld [vmem:[#allocation2] sm:$0xff]
  %68 = vadd.xlane.f32.xlu0 %v64
  %v69 = vpop.xlane.xlu0 %68
  %v70 = vadd.f32 %v67, %v69
  %vm71 = vcmask 7168
  %72 = vst.msk [vmem:[#allocation2] sm:$0xff] %vm71, %v70
  %v73 = vld [vmem:[#allocation3] sm:$0xff]
  %v74 = vmul.f32 %v64, %v64
  %75 = vadd.xlane.f32.xlu0 %v74
  %v76 = vpop.xlane.xlu0 %75
  %v77 = vadd.f32 %v73, %v76
  %78 = vst.msk [vmem:[#allocation3] sm:$0xff] %vm71, %v77
  %s79 = smul.u32 0, 128
  %s80 = sshra.s32 %s79, 7
  %s81 = sand.u32 %s79, 127
  %s82 = scalar_lea.vmem %s4, %s80
  %83 = vst [vmem:[%s82] sm:$0xff] %v64
  // Predicated region
  $region22: #{autoencoder_forward.4} parent=0 // pred_check
    %p84 = pneg %p18
  $region23: #{autoencoder_forward.4} parent=0 // pred_check_branch
    %86 = sbr.rel (%p84) target = $region25
  $region24: #{autoencoder_forward.4} parent=0 // pred_region
    %v87 = vld [vmem:[#allocation2] sm:$0xff]
    %v88 = vmul.f32 %v87, 0.0078125
    %v89 = vld [vmem:[#allocation3] sm:$0xff]
    %v90 = vmul.f32 %v89, 0.0078125
    %v91 = vmul.f32 %v88, %v88
    %v92 = vsub.f32 %v90, %v91
    %v93 = vld [vmem:[%s2] sm:$0xff]
    %v94 = vadd.f32 %v92, 1e-05
    %v95 = vrsqrt.pop %v94
    %v96 = vmul.f32 %v95, %v94
    %v97 = vmul.f32 %v96, %v95
    %v98 = vmul.f32 0.5, %v97
    %v99 = vsub.f32 1.5, %v98
    %v100 = vmul.f32 %v95, %v99
    %vm101 = vweird.f32 %v94
    %vm102 = vweird.f32 %v95
    %vm103 = vmor %vm101, %vm102
    %v104 = vsel %vm103, %v95, %v100
    %v105 = vmul.f32 %v93, %v104
    %v106 = vld [vmem:[%s3] sm:$0xff]
    %v107 = vmul.f32 %v88, %v105
    %v108 = vsub.f32 %v106, %v107
    %v109 = vld [vmem:[%s4] sm:$0xff]
    %111 = vset.pattern.permute.xlu0 0
    %112 = vperm.xlu0 %111, %v105
    %v113 = vpop.permute.xlu0 %112
    %v115 = vmul.f32 %v109, %v113
    %117 = vset.pattern.permute.xlu0 0
    %118 = vperm.xlu0 %117, %v108
    %v119 = vpop.permute.xlu0 %118
    %v121 = vadd.f32 %v115, %v119
    %v122 = vmax.f32 %v121, 0.0
    %123 = vst [vmem:[%s4] sm:$0xff] %v122
  $region25: #{autoencoder_forward.4} parent=0 // pred_fallthru
    _
  // Predicated region
  $region26: #{autoencoder_forward.4} parent=0 // pred_check
    _
  $region27: #{autoencoder_forward.4} parent=0 // pred_check_branch
    %125 = sbr.rel (0) target = $region29
  $region28: #{autoencoder_forward.4} parent=0 // pred_region
    _
  $region29: #{autoencoder_forward.4} parent=0 // pred_fallthru
    _
  // Predicated region
  $region30: #{autoencoder_forward.4} parent=0 // pred_check
    _
  $region31: #{autoencoder_forward.4} parent=0 // pred_check_branch
    %127 = sbr.rel (0) target = $region33
  $region32: #{autoencoder_forward.4} parent=0 // pred_region
    _
  $region33: #{autoencoder_forward.4} parent=0 // pred_fallthru
    _

// kernel: autoencoder_forward.5
$region0: #{autoencoder_forward.5}
  #allocation0 [shape = 'u32[]', space=smem, size = 0x4, offset = 0x4, fixed_abs, tag = 'smem constant byte address 0x4 - core index']
  #allocation1 [shape = 'u32[72,128]{1,0:T(1,128)}', space=vmem, size = 0x9000, scoped, tag = 'internal scratch']
  #allocation2 [shape = 'f32[16,1]{1,0:T(8,128)}', space=vmem, size = 0x2000, scoped, tag = 'scratch operand']
  #allocation3 [shape = 'f32[16,1]{1,0:T(8,128)}', space=vmem, size = 0x2000, scoped, tag = 'scratch operand']
  %s0 = inlined_call_operand.vmem [shape: bf16[72,128], index: 0, kind: input, shape index: {}]
  %s1 = inlined_call_operand.vmem [shape: bf16[16,72], index: 1, kind: input, shape index: {}]
  %s2 = inlined_call_operand.vmem [shape: f32[16,1], index: 2, kind: input, shape index: {}]
  %s3 = inlined_call_operand.vmem [shape: f32[16,1], index: 3, kind: input, shape index: {}]
  %s4 = inlined_call_operand.vmem [shape: f32[16,128], index: 4, kind: output, shape index: {}]
  %s5 = sld [smem:[#allocation0]]
  $region34: #{autoencoder_forward.5} parent=0
    _
  %s7 = ssub.s32 1, %s5
  %s8 = scalar_select 0, %s7, %s5
  // Predicated region
  $region2: #{autoencoder_forward.5} parent=0 // pred_check
    _
  $region3: #{autoencoder_forward.5} parent=0 // pred_check_branch
    %10 = sbr.rel (0) target = $region5
  $region4: #{autoencoder_forward.5} parent=0 // pred_region
    _
  $region5: #{autoencoder_forward.5} parent=0 // pred_fallthru
    _
  // Predicated region
  $region6: #{autoencoder_forward.5} parent=0 // pred_check
    _
  $region7: #{autoencoder_forward.5} parent=0 // pred_check_branch
    %12 = sbr.rel (0) target = $region9
  $region8: #{autoencoder_forward.5} parent=0 // pred_region
    _
  $region9: #{autoencoder_forward.5} parent=0 // pred_fallthru
    _
  // Predicated region
  $region10: #{autoencoder_forward.5} parent=0 // pred_check
    _
  $region11: #{autoencoder_forward.5} parent=0 // pred_check_branch
    %14 = sbr.rel (0) target = $region13
  $region12: #{autoencoder_forward.5} parent=0 // pred_region
    _
  $region13: #{autoencoder_forward.5} parent=0 // pred_fallthru
    _
  // Predicated region
  $region14: #{autoencoder_forward.5} parent=0 // pred_check
    _
  $region15: #{autoencoder_forward.5} parent=0 // pred_check_branch
    %16 = sbr.rel (0) target = $region17
  $region16: #{autoencoder_forward.5} parent=0 // pred_region
    _
  $region17: #{autoencoder_forward.5} parent=0 // pred_fallthru
    _
  %p18 = scmp.eq.s32.totalorder 0, 0
  // Predicated region
  $region18: #{autoencoder_forward.5} parent=0 // pred_check
    %p19 = pneg %p18
  $region19: #{autoencoder_forward.5} parent=0 // pred_check_branch
    %21 = sbr.rel (%p19) target = $region21
  $region20: #{autoencoder_forward.5} parent=0 // pred_region
    %vm22 = vcmask 7168
    %23 = vst.msk [vmem:[#allocation2] sm:$0xff] %vm22, 0.0
    %24 = vst.msk [vmem:[#allocation2 + $0x8] sm:$0xff] %vm22, 0.0
    %25 = vst.msk [vmem:[#allocation3] sm:$0xff] %vm22, 0.0
    %26 = vst.msk [vmem:[#allocation3 + $0x8] sm:$0xff] %vm22, 0.0
  $region21: #{autoencoder_forward.5} parent=0 // pred_fallthru
    _
  %v27 = vld [vmem:[%s1] sm:$0xf]
  %v28 = vld [vmem:[%s1 + $0x4] sm:$0xf]
  %v29 = vld [vmem:[%s0] sm:$0xf]
  %v30 = vld [vmem:[%s0 + $0x4] sm:$0xf]
  %v31 = vld [vmem:[%s0 + $0x8] sm:$0xf]
  %v32 = vld [vmem:[%s0 + $0xc] sm:$0xf]
  %v33 = vld [vmem:[%s0 + $0x10] sm:$0xf]
  %v34 = vld [vmem:[%s0 + $0x14] sm:$0xf]
  %v35 = vld [vmem:[%s0 + $0x18] sm:$0xf]
  %v36 = vld [vmem:[%s0 + $0x1c] sm:$0xf]
  %v37 = vld [vmem:[%s0 + $0x20] sm:$0xf]
  %v40 = vunpack.c.l.b16 %v27
  %v41 = vunpack.c.l.b16 %v28
  %v42 = vpack.c.b16 %v41, %v40
  %v52 = vunpack.c.l.b16 %v29
  %v53 = vunpack.c.l.b16 %v30
  %v54 = vunpack.c.l.b16 %v31
  %v55 = vunpack.c.l.b16 %v32
  %v56 = vunpack.c.l.b16 %v33
  %v57 = vunpack.c.l.b16 %v34
  %v58 = vunpack.c.l.b16 %v35
  %v59 = vunpack.c.l.b16 %v36
  %v60 = vunpack.c.l.b16 %v37
  %v61 = vpack.c.b16 %v53, %v52
  %v62 = vpack.c.b16 %v55, %v54
  %v63 = vpack.c.b16 %v57, %v56
  %v64 = vpack.c.b16 %v59, %v58
  %v65 = vpack.c.b16 %v60, %v60
  %vm70 = vcmask 588800
  %v72 = vsel %vm70, %v42, 0
  %vm74 = vcmask 1043456
  %v76 = vsel %vm74, %v65, 0
  %78 = vmatpush.bf16.msra.mxu0 0
  %79 = vmatpush.bf16.msra.mxu0 0
  %80 = vmatpush.bf16.msra.mxu0 0
  %81 = vmatpush.bf16.msra.mxu0 %v76
  %82 = vmatpush.bf16.msra.mxu0 %v64
  %83 = vmatpush.bf16.msra.mxu0 %v63
  %84 = vmatpush.bf16.msra.mxu0 %v62
  %85 = vmatpush.bf16.msra.mxu0 %v61
  %86 = vmatmul.bf16.gmra.mxu0 %v72
  %v87 = vpop.f32.mrf.mxu0
  %v88 = vadd.f32 0.0, %v87
  %v89 = vpop.f32.mrf.mxu0
  %v90 = vadd.f32 0.0, %v89
  %91 = vdwg.mxu0
  %v92 = vld [vmem:[#allocation2] sm:$0xff]
  %v93 = vld [vmem:[#allocation2 + $0x8] sm:$0xff]
  %94 = vadd.xlane.f32.xlu0 %v88
  %v95 = vpop.xlane.xlu0 %94
  %96 = vadd.xlane.f32.xlu0 %v90
  %v97 = vpop.xlane.xlu0 %96
  %v98 = vadd.f32 %v92, %v95
  %v99 = vadd.f32 %v93, %v97
  %vm100 = vcmask 7168
  %101 = vst.msk [vmem:[#allocation2] sm:$0xff] %vm100, %v98
  %102 = vst.msk [vmem:[#allocation2 + $0x8] sm:$0xff] %vm100, %v99
  %v103 = vld [vmem:[#allocation3] sm:$0xff]
  %v104 = vld [vmem:[#allocation3 + $0x8] sm:$0xff]
  %v105 = vmul.f32 %v88, %v88
  %v106 = vmul.f32 %v90, %v90
  %107 = vadd.xlane.f32.xlu0 %v105
  %v108 = vpop.xlane.xlu0 %107
  %109 = vadd.xlane.f32.xlu0 %v106
  %v110 = vpop.xlane.xlu0 %109
  %v111 = vadd.f32 %v103, %v108
  %v112 = vadd.f32 %v104, %v110
  %113 = vst.msk [vmem:[#allocation3] sm:$0xff] %vm100, %v111
  %114 = vst.msk [vmem:[#allocation3 + $0x8] sm:$0xff] %vm100, %v112
  %s115 = smul.u32 0, 128
  %s116 = sshra.s32 %s115, 7
  %s117 = sand.u32 %s115, 127
  %s118 = scalar_lea.vmem %s4, %s116
  %119 = vst [vmem:[%s118] sm:$0xff] %v88
  %120 = vst [vmem:[%s118 + $0x8] sm:$0xff] %v90
  // Predicated region
  $region22: #{autoencoder_forward.5} parent=0 // pred_check
    %p121 = pneg %p18
  $region23: #{autoencoder_forward.5} parent=0 // pred_check_branch
    %123 = sbr.rel (%p121) target = $region25
  $region24: #{autoencoder_forward.5} parent=0 // pred_region
    %v124 = vld [vmem:[#allocation2] sm:$0xff]
    %v125 = vld [vmem:[#allocation2 + $0x8] sm:$0xff]
    %v126 = vmul.f32 %v124, 0.03125
    %v127 = vmul.f32 %v125, 0.03125
    %v128 = vld [vmem:[#allocation3] sm:$0xff]
    %v129 = vld [vmem:[#allocation3 + $0x8] sm:$0xff]
    %v130 = vmul.f32 %v128, 0.03125
    %v131 = vmul.f32 %v129, 0.03125
    %v132 = vmul.f32 %v126, %v126
    %v133 = vmul.f32 %v127, %v127
    %v134 = vsub.f32 %v130, %v132
    %v135 = vsub.f32 %v131, %v133
    %v136 = vld [vmem:[%s2] sm:$0xff]
    %v137 = vld [vmem:[%s2 + $0x8] sm:$0xff]
    %v138 = vadd.f32 %v134, 1e-05
    %v139 = vadd.f32 %v135, 1e-05
    %v140 = vrsqrt.pop %v138
    %v141 = vmul.f32 %v140, %v138
    %v142 = vmul.f32 %v141, %v140
    %v143 = vmul.f32 0.5, %v142
    %v144 = vsub.f32 1.5, %v143
    %v145 = vmul.f32 %v140, %v144
    %vm146 = vweird.f32 %v138
    %vm147 = vweird.f32 %v140
    %vm148 = vmor %vm146, %vm147
    %v149 = vsel %vm148, %v140, %v145
    %v150 = vrsqrt.pop %v139
    %v151 = vmul.f32 %v150, %v139
    %v152 = vmul.f32 %v151, %v150
    %v153 = vmul.f32 0.5, %v152
    %v154 = vsub.f32 1.5, %v153
    %v155 = vmul.f32 %v150, %v154
    %vm156 = vweird.f32 %v139
    %vm157 = vweird.f32 %v150
    %vm158 = vmor %vm156, %vm157
    %v159 = vsel %vm158, %v150, %v155
    %v160 = vmul.f32 %v136, %v149
    %v161 = vmul.f32 %v137, %v159
    %v162 = vld [vmem:[%s3] sm:$0xff]
    %v163 = vld [vmem:[%s3 + $0x8] sm:$0xff]
    %v164 = vmul.f32 %v126, %v160
    %v165 = vmul.f32 %v127, %v161
    %v166 = vsub.f32 %v162, %v164
    %v167 = vsub.f32 %v163, %v165
    %v168 = vld [vmem:[%s4] sm:$0xff]
    %v169 = vld [vmem:[%s4 + $0x8] sm:$0xff]
    %171 = vset.pattern.permute.xlu0 0
    %172 = vperm.xlu0 %171, %v160
    %v173 = vpop.permute.xlu0 %172
    %176 = vset.pattern.permute.xlu0 0
    %177 = vperm.xlu0 %176, %v161
    %v178 = vpop.permute.xlu0 %177
    %v180 = vmul.f32 %v168, %v173
    %v181 = vmul.f32 %v169, %v178
    %183 = vset.pattern.permute.xlu0 0
    %184 = vperm.xlu0 %183, %v166
    %v185 = vpop.permute.xlu0 %184
    %188 = vset.pattern.permute.xlu0 0
    %189 = vperm.xlu0 %188, %v167
    %v190 = vpop.permute.xlu0 %189
    %v192 = vadd.f32 %v180, %v185
    %v193 = vadd.f32 %v181, %v190
    %v194 = vmax.f32 %v192, 0.0
    %v195 = vmax.f32 %v193, 0.0
    %196 = vst [vmem:[%s4] sm:$0xff] %v194
    %197 = vst [vmem:[%s4 + $0x8] sm:$0xff] %v195
  $region25: #{autoencoder_forward.5} parent=0 // pred_fallthru
    _
  // Predicated region
  $region26: #{autoencoder_forward.5} parent=0 // pred_check
    _
  $region27: #{autoencoder_forward.5} parent=0 // pred_check_branch
    %199 = sbr.rel (0) target = $region29
  $region28: #{autoencoder_forward.5} parent=0 // pred_region
    _
  $region29: #{autoencoder_forward.5} parent=0 // pred_fallthru
    _
  // Predicated region
  $region30: #{autoencoder_forward.5} parent=0 // pred_check
    _
  $region31: #{autoencoder_forward.5} parent=0 // pred_check_branch
    %201 = sbr.rel (0) target = $region33
  $region32: #{autoencoder_forward.5} parent=0 // pred_region
    _
  $region33: #{autoencoder_forward.5} parent=0 // pred_fallthru
    _

// kernel: autoencoder_forward.6
$region0: #{autoencoder_forward.6}
  #allocation0 [shape = 'u32[]', space=smem, size = 0x4, offset = 0x4, fixed_abs, tag = 'smem constant byte address 0x4 - core index']
  #allocation1 [shape = 'u32[72,128]{1,0:T(1,128)}', space=vmem, size = 0x9000, scoped, tag = 'internal scratch']
  #allocation2 [shape = 'f32[8,1]{1,0:T(8,128)}', space=vmem, size = 0x1000, scoped, tag = 'scratch operand']
  #allocation3 [shape = 'f32[8,1]{1,0:T(8,128)}', space=vmem, size = 0x1000, scoped, tag = 'scratch operand']
  %s0 = inlined_call_operand.vmem [shape: bf16[144,128], index: 0, kind: input, shape index: {}]
  %s1 = inlined_call_operand.vmem [shape: bf16[8,144], index: 1, kind: input, shape index: {}]
  %s2 = inlined_call_operand.vmem [shape: f32[8,1], index: 2, kind: input, shape index: {}]
  %s3 = inlined_call_operand.vmem [shape: f32[8,1], index: 3, kind: input, shape index: {}]
  %s4 = inlined_call_operand.vmem [shape: f32[8,128], index: 4, kind: output, shape index: {}]
  %s5 = sld [smem:[#allocation0]]
  $region34: #{autoencoder_forward.6} parent=0
    _
  %s7 = ssub.s32 1, %s5
  %s8 = scalar_select 0, %s7, %s5
  // Predicated region
  $region2: #{autoencoder_forward.6} parent=0 // pred_check
    _
  $region3: #{autoencoder_forward.6} parent=0 // pred_check_branch
    %10 = sbr.rel (0) target = $region5
  $region4: #{autoencoder_forward.6} parent=0 // pred_region
    _
  $region5: #{autoencoder_forward.6} parent=0 // pred_fallthru
    _
  // Predicated region
  $region6: #{autoencoder_forward.6} parent=0 // pred_check
    _
  $region7: #{autoencoder_forward.6} parent=0 // pred_check_branch
    %12 = sbr.rel (0) target = $region9
  $region8: #{autoencoder_forward.6} parent=0 // pred_region
    _
  $region9: #{autoencoder_forward.6} parent=0 // pred_fallthru
    _
  // Predicated region
  $region10: #{autoencoder_forward.6} parent=0 // pred_check
    _
  $region11: #{autoencoder_forward.6} parent=0 // pred_check_branch
    %14 = sbr.rel (0) target = $region13
  $region12: #{autoencoder_forward.6} parent=0 // pred_region
    _
  $region13: #{autoencoder_forward.6} parent=0 // pred_fallthru
    _
  // Predicated region
  $region14: #{autoencoder_forward.6} parent=0 // pred_check
    _
  $region15: #{autoencoder_forward.6} parent=0 // pred_check_branch
    %16 = sbr.rel (0) target = $region17
  $region16: #{autoencoder_forward.6} parent=0 // pred_region
    _
  $region17: #{autoencoder_forward.6} parent=0 // pred_fallthru
    _
  %p18 = scmp.eq.s32.totalorder 0, 0
  // Predicated region
  $region18: #{autoencoder_forward.6} parent=0 // pred_check
    %p19 = pneg %p18
  $region19: #{autoencoder_forward.6} parent=0 // pred_check_branch
    %21 = sbr.rel (%p19) target = $region21
  $region20: #{autoencoder_forward.6} parent=0 // pred_region
    %vm22 = vcmask 7168
    %23 = vst.msk [vmem:[#allocation2] sm:$0xff] %vm22, 0.0
    %24 = vst.msk [vmem:[#allocation3] sm:$0xff] %vm22, 0.0
  $region21: #{autoencoder_forward.6} parent=0 // pred_fallthru
    _
  %v25 = vld [vmem:[%s1] sm:$0xff]
  %v26 = vld [vmem:[%s0] sm:$0xf]
  %v27 = vld [vmem:[%s0 + $0x4] sm:$0xf]
  %v28 = vld [vmem:[%s0 + $0x8] sm:$0xf]
  %v29 = vld [vmem:[%s0 + $0xc] sm:$0xf]
  %v30 = vld [vmem:[%s0 + $0x10] sm:$0xf]
  %v31 = vld [vmem:[%s0 + $0x14] sm:$0xf]
  %v32 = vld [vmem:[%s0 + $0x18] sm:$0xf]
  %v33 = vld [vmem:[%s0 + $0x1c] sm:$0xf]
  %v34 = vld [vmem:[%s0 + $0x20] sm:$0xf]
  %v35 = vld [vmem:[%s0 + $0x24] sm:$0xf]
  %v36 = vld [vmem:[%s0 + $0x28] sm:$0xf]
  %v37 = vld [vmem:[%s0 + $0x2c] sm:$0xf]
  %v38 = vld [vmem:[%s0 + $0x30] sm:$0xf]
  %v39 = vld [vmem:[%s0 + $0x34] sm:$0xf]
  %v40 = vld [vmem:[%s0 + $0x38] sm:$0xf]
  %v41 = vld [vmem:[%s0 + $0x3c] sm:$0xf]
  %v42 = vld [vmem:[%s0 + $0x40] sm:$0xf]
  %v43 = vld [vmem:[%s0 + $0x44] sm:$0xf]
  %v45 = vunpack.c.l.b16 %v25
  %v46 = vunpack.c.h.b16 %v25
  %v47 = vpack.c.b16 %v45, %v45
  %v48 = vpack.c.b16 %v46, %v46
  %v68 = vunpack.c.l.b16 %v26
  %v69 = vunpack.c.l.b16 %v27
  %v70 = vunpack.c.l.b16 %v28
  %v71 = vunpack.c.l.b16 %v29
  %v72 = vunpack.c.l.b16 %v30
  %v73 = vunpack.c.l.b16 %v31
  %v74 = vunpack.c.l.b16 %v32
  %v75 = vunpack.c.l.b16 %v33
  %v76 = vunpack.c.l.b16 %v34
  %v77 = vunpack.c.l.b16 %v35
  %v78 = vunpack.c.l.b16 %v36
  %v79 = vunpack.c.l.b16 %v37
  %v80 = vunpack.c.l.b16 %v38
  %v81 = vunpack.c.l.b16 %v39
  %v82 = vunpack.c.l.b16 %v40
  %v83 = vunpack.c.l.b16 %v41
  %v84 = vunpack.c.l.b16 %v42
  %v85 = vunpack.c.l.b16 %v43
  %v86 = vpack.c.b16 %v69, %v68
  %v87 = vpack.c.b16 %v71, %v70
  %v88 = vpack.c.b16 %v73, %v72
  %v89 = vpack.c.b16 %v75, %v74
  %v90 = vpack.c.b16 %v77, %v76
  %v91 = vpack.c.b16 %v79, %v78
  %v92 = vpack.c.b16 %v81, %v80
  %v93 = vpack.c.b16 %v83, %v82
  %v94 = vpack.c.b16 %v85, %v84
  %vm104 = vcmask 130048
  %v106 = vsel %vm104, %v48, 0
  %108 = vmatpush.bf16.msra.mxu0 %v93
  %109 = vmatpush.bf16.msra.mxu0 %v92
  %110 = vmatpush.bf16.msra.mxu0 %v91
  %111 = vmatpush.bf16.msra.mxu0 %v90
  %112 = vmatpush.bf16.msra.mxu0 %v89
  %113 = vmatpush.bf16.msra.mxu0 %v88
  %114 = vmatpush.bf16.msra.mxu0 %v87
  %115 = vmatpush.bf16.msra.mxu0 %v86
  %116 = vmatmul.bf16.gmra.mxu0 %v47
  %v117 = vpop.f32.mrf.mxu0
  %v118 = vadd.f32 0.0, %v117
  %v119 = vpop.f32.mrf.mxu0
  %120 = vdwg.mxu0
  %121 = vmatpush.bf16.msra.mxu0 0
  %122 = vmatpush.bf16.msra.mxu0 0
  %123 = vmatpush.bf16.msra.mxu0 0
  %124 = vmatpush.bf16.msra.mxu0 0
  %125 = vmatpush.bf16.msra.mxu0 0
  %126 = vmatpush.bf16.msra.mxu0 0
  %127 = vmatpush.bf16.msra.mxu0 0
  %128 = vmatpush.bf16.msra.mxu0 %v94
  %129 = vmatmul.bf16.gmra.mxu0 %v106
  %v130 = vpop.f32.mrf.mxu0
  %v131 = vadd.f32 %v118, %v130
  %v132 = vpop.f32.mrf.mxu0
  %133 = vdwg.mxu0
  %v134 = vld [vmem:[#allocation2] sm:$0xff]
  %135 = vadd.xlane.f32.xlu0 %v131
  %v136 = vpop.xlane.xlu0 %135
  %v137 = vadd.f32 %v134, %v136
  %vm138 = vcmask 7168
  %139 = vst.msk [vmem:[#allocation2] sm:$0xff] %vm138, %v137
  %v140 = vld [vmem:[#allocation3] sm:$0xff]
  %v141 = vmul.f32 %v131, %v131
  %142 = vadd.xlane.f32.xlu0 %v141
  %v143 = vpop.xlane.xlu0 %142
  %v144 = vadd.f32 %v140, %v143
  %145 = vst.msk [vmem:[#allocation3] sm:$0xff] %vm138, %v144
  %s146 = smul.u32 0, 128
  %s147 = sshra.s32 %s146, 7
  %s148 = sand.u32 %s146, 127
  %s149 = scalar_lea.vmem %s4, %s147
  %150 = vst [vmem:[%s149] sm:$0xff] %v131
  // Predicated region
  $region22: #{autoencoder_forward.6} parent=0 // pred_check
    %p151 = pneg %p18
  $region23: #{autoencoder_forward.6} parent=0 // pred_check_branch
    %153 = sbr.rel (%p151) target = $region25
  $region24: #{autoencoder_forward.6} parent=0 // pred_region
    %v154 = vld [vmem:[#allocation2] sm:$0xff]
    %v155 = vmul.f32 %v154, 0.0078125
    %v156 = vld [vmem:[#allocation3] sm:$0xff]
    %v157 = vmul.f32 %v156, 0.0078125
    %v158 = vmul.f32 %v155, %v155
    %v159 = vsub.f32 %v157, %v158
    %v160 = vld [vmem:[%s2] sm:$0xff]
    %v161 = vadd.f32 %v159, 1e-05
    %v162 = vrsqrt.pop %v161
    %v163 = vmul.f32 %v162, %v161
    %v164 = vmul.f32 %v163, %v162
    %v165 = vmul.f32 0.5, %v164
    %v166 = vsub.f32 1.5, %v165
    %v167 = vmul.f32 %v162, %v166
    %vm168 = vweird.f32 %v161
    %vm169 = vweird.f32 %v162
    %vm170 = vmor %vm168, %vm169
    %v171 = vsel %vm170, %v162, %v167
    %v172 = vmul.f32 %v160, %v171
    %v173 = vld [vmem:[%s3] sm:$0xff]
    %v174 = vmul.f32 %v155, %v172
    %v175 = vsub.f32 %v173, %v174
    %v176 = vld [vmem:[%s4] sm:$0xff]
    %178 = vset.pattern.permute.xlu0 0
    %179 = vperm.xlu0 %178, %v172
    %v180 = vpop.permute.xlu0 %179
    %v182 = vmul.f32 %v176, %v180
    %184 = vset.pattern.permute.xlu0 0
    %185 = vperm.xlu0 %184, %v175
    %v186 = vpop.permute.xlu0 %185
    %v188 = vadd.f32 %v182, %v186
    %v189 = vmax.f32 %v188, 0.0
    %190 = vst [vmem:[%s4] sm:$0xff] %v189
  $region25: #{autoencoder_forward.6} parent=0 // pred_fallthru
    _
  // Predicated region
  $region26: #{autoencoder_forward.6} parent=0 // pred_check
    _
  $region27: #{autoencoder_forward.6} parent=0 // pred_check_branch
    %192 = sbr.rel (0) target = $region29
  $region28: #{autoencoder_forward.6} parent=0 // pred_region
    _
  $region29: #{autoencoder_forward.6} parent=0 // pred_fallthru
    _
  // Predicated region
  $region30: #{autoencoder_forward.6} parent=0 // pred_check
    _
  $region31: #{autoencoder_forward.6} parent=0 // pred_check_branch
    %194 = sbr.rel (0) target = $region33
  $region32: #{autoencoder_forward.6} parent=0 // pred_region
    _
  $region33: #{autoencoder_forward.6} parent=0 // pred_fallthru
    _

// kernel: autoencoder_forward.7
$region0: #{autoencoder_forward.7}
  #allocation0 [shape = 'u32[]', space=smem, size = 0x4, offset = 0x4, fixed_abs, tag = 'smem constant byte address 0x4 - core index']
  #allocation1 [shape = 'u32[72,128]{1,0:T(1,128)}', space=vmem, size = 0x9000, scoped, tag = 'internal scratch']
  %s0 = inlined_call_operand.vmem [shape: bf16[72,512], index: 0, kind: input, shape index: {}]
  %s1 = inlined_call_operand.vmem [shape: bf16[8,72], index: 1, kind: input, shape index: {}]
  %s2 = inlined_call_operand.vmem [shape: f32[8,1], index: 2, kind: input, shape index: {}]
  %s3 = inlined_call_operand.vmem [shape: f32[8,512], index: 3, kind: output, shape index: {}]
  %s4 = sld [smem:[#allocation0]]
  $region83: #{autoencoder_forward.7} parent=0
    _
  %s6 = ssub.s32 1, %s4
  %s7 = scalar_select 0, %s6, %s4
  $region1: #{autoencoder_forward.7} parent=0
    #allocation2 [shape = 'u8[73728]{0}', space=vmem, size = 0x12000, scoped, tag = 'input window, operand 0']
    loop: start=0, step=1, limit=4
    $region2: #{autoencoder_forward.7} parent=1 // loop_pre_header
      _
    $region3: #{autoencoder_forward.7} parent=1 // loop_header
      %s9 = sphi 0, %s13
      %p10 = scmp.ge.s32.totalorder %s9, 4
      %s19 = sphi 0, %s21
      %s22 = sphi 0, %s19
      %s23 = sphi 0, %s22
      %s39 = sphi 0, %s23
      %s43 = sphi 0, %s43
      %s45 = sphi 0, %s43
      %s46 = sphi 0, %s45
      %s60 = sphi 0, %s46
      %s64 = sphi 0, %s64
      %s66 = sphi 0, %s64
      %s67 = sphi 0, %s66
      %s81 = sphi 0, %s67
      %s87 = sphi 0, %s89
      %s90 = sphi 0, %s87
      %s91 = sphi 0, %s90
      %s107 = sphi 0, %s91
    $region4: #{autoencoder_forward.7} parent=1 // loop_header_branch
      %12 = sbr.rel (%p10) target = $region8
    $region5: #{autoencoder_forward.7} parent=1 // loop_body
      %s14 = ssub.s32 %s9, 1
      %s15 = ssub.s32 %s9, 2
      %s16 = sadd.s32 %s9, 1
      %s17 = ssub.s32 %s9, %s16
      %p18 = scmp.eq.s32.totalorder %s17, 0
      %s20 = sadd.s32 %s19, 1
      %s21 = scalar_select %p18, %s19, %s20
      %p24 = pneg %p18
      %p25 = scmp.eq.s32.totalorder %s9, 1
      %p26 = por %p24, %p25
      %p27 = scmp.ne.s32.totalorder %s19, %s22
      %p28 = scmp.eq.s32.totalorder %s9, 0
      %p29 = por %p27, %p28
      %p30 = scmp.ne.s32.totalorder %s19, %s22
      %p31 = scmp.eq.s32.totalorder %s14, 1
      %p32 = por %p30, %p31
      %p33 = scmp.ne.s32.totalorder %s22, %s23
      %p34 = scmp.eq.s32.totalorder %s14, 0
      %p35 = por %p33, %p34
      %p36 = scmp.ne.s32.totalorder %s22, %s23
      %p37 = scmp.eq.s32.totalorder %s15, 1
      %p38 = por %p36, %p37
      %p40 = scmp.ne.s32.totalorder %s23, %s39
      %p41 = scmp.eq.s32.totalorder %s15, 0
      %p42 = por %p40, %p41
      %s44 = sadd.s32 %s43, 1
      %p47 = scmp.eq.s32.totalorder %s9, 1
      %p48 = scmp.ne.s32.totalorder %s43, %s45
      %p49 = scmp.eq.s32.totalorder %s9, 0
      %p50 = por %p48, %p49
      %p51 = scmp.ne.s32.totalorder %s43, %s45
      %p52 = scmp.eq.s32.totalorder %s14, 1
      %p53 = por %p51, %p52
      %p54 = scmp.ne.s32.totalorder %s45, %s46
      %p55 = scmp.eq.s32.totalorder %s14, 0
      %p56 = por %p54, %p55
      %p57 = scmp.ne.s32.totalorder %s45, %s46
      %p58 = scmp.eq.s32.totalorder %s15, 1
      %p59 = por %p57, %p58
      %p61 = scmp.ne.s32.totalorder %s46, %s60
      %p62 = scmp.eq.s32.totalorder %s15, 0
      %p63 = por %p61, %p62
      %s65 = sadd.s32 %s64, 1
      %p68 = scmp.eq.s32.totalorder %s9, 1
      %p69 = scmp.ne.s32.totalorder %s64, %s66
      %p70 = scmp.eq.s32.totalorder %s9, 0
      %p71 = por %p69, %p70
      %p72 = scmp.ne.s32.totalorder %s64, %s66
      %p73 = scmp.eq.s32.totalorder %s14, 1
      %p74 = por %p72, %p73
      %p75 = scmp.ne.s32.totalorder %s66, %s67
      %p76 = scmp.eq.s32.totalorder %s14, 0
      %p77 = por %p75, %p76
      %p78 = scmp.ne.s32.totalorder %s66, %s67
      %p79 = scmp.eq.s32.totalorder %s15, 1
      %p80 = por %p78, %p79
      %p82 = scmp.ne.s32.totalorder %s67, %s81
      %p83 = scmp.eq.s32.totalorder %s15, 0
      %p84 = por %p82, %p83
      %s85 = ssub.s32 %s9, %s16
      %p86 = scmp.eq.s32.totalorder %s85, 0
      %s88 = sadd.s32 %s87, 1
      %s89 = scalar_select %p86, %s87, %s88
      %p92 = pneg %p86
      %p93 = scmp.eq.s32.totalorder %s9, 1
      %p94 = por %p92, %p93
      %p95 = scmp.ne.s32.totalorder %s87, %s90
      %p96 = scmp.eq.s32.totalorder %s9, 0
      %p97 = por %p95, %p96
      %p98 = scmp.ne.s32.totalorder %s87, %s90
      %p99 = scmp.eq.s32.totalorder %s14, 1
      %p100 = por %p98, %p99
      %p101 = scmp.ne.s32.totalorder %s90, %s91
      %p102 = scmp.eq.s32.totalorder %s14, 0
      %p103 = por %p101, %p102
      %p104 = scmp.ne.s32.totalorder %s90, %s91
      %p105 = scmp.eq.s32.totalorder %s15, 1
      %p106 = por %p104, %p105
      %p108 = scmp.ne.s32.totalorder %s91, %s107
      %p109 = scmp.eq.s32.totalorder %s15, 0
      %p110 = por %p108, %p109
      %p111 = scmp.le.s32.totalorder 1, %s9
      %p112 = scmp.lt.s32.totalorder %s9, 3
      %p113 = pnand %p111, %p112
      %p114 = pneg %p113
      // Predicated region
      $region9: #{autoencoder_forward.7} parent=5 // pred_check
        _
      $region10: #{autoencoder_forward.7} parent=5 // pred_check_branch
        %116 = sbr.rel (%p113) target = $region12
      $region11: #{autoencoder_forward.7} parent=5 // pred_region
        %s117 = ssub.s32 %s9, 1
        // Predicated region
        $region13: #{autoencoder_forward.7} parent=11 // pred_check
          %p118 = pneg %p56
        $region14: #{autoencoder_forward.7} parent=11 // pred_check_branch
          %120 = sbr.rel (%p118) target = $region16
        $region15: #{autoencoder_forward.7} parent=11 // pred_region
          _
        $region16: #{autoencoder_forward.7} parent=11 // pred_fallthru
          _
        // Predicated region
        $region17: #{autoencoder_forward.7} parent=11 // pred_check
          %p121 = pneg %p77
        $region18: #{autoencoder_forward.7} parent=11 // pred_check_branch
          %123 = sbr.rel (%p121) target = $region20
        $region19: #{autoencoder_forward.7} parent=11 // pred_region
          _
        $region20: #{autoencoder_forward.7} parent=11 // pred_fallthru
          _
      $region12: #{autoencoder_forward.7} parent=5 // pred_fallthru
        _
      %p124 = scmp.lt.s32.totalorder %s9, 2
      // Predicated region
      $region21: #{autoencoder_forward.7} parent=5 // pred_check
        %p125 = pneg %p124
      $region22: #{autoencoder_forward.7} parent=5 // pred_check_branch
        %127 = sbr.rel (%p125) target = $region24
      $region23: #{autoencoder_forward.7} parent=5 // pred_region
        // Predicated region
        $region25: #{autoencoder_forward.7} parent=23 // pred_check
          %p128 = pneg %p29
        $region26: #{autoencoder_forward.7} parent=23 // pred_check_branch
          %130 = sbr.rel (%p128) target = $region28
        $region27: #{autoencoder_forward.7} parent=23 // pred_region
          %s131 = sand.u32 %s19, 1
          %s132 = sand.u32 %s19, 1
          %s133 = smul.addr %s132, 72
          %s134 = scalar_lea.vmem [#allocation2], %s133
          %s135 = smul.u32 2, %s9
          %s136 = smul.addr %s135, 4
          %s137 = scalar_lea.vmem %s0, %s136
          // Predicated region
          $region29: #{autoencoder_forward.7} parent=27 // pred_check
            _
          $region30: #{autoencoder_forward.7} parent=27 // pred_check_branch
            %139 = sbr.rel (0) target = $region32
          $region31: #{autoencoder_forward.7} parent=27 // pred_region
            // Predicated region
            $region33: #{autoencoder_forward.7} parent=31 // pred_check
              _
            $region34: #{autoencoder_forward.7} parent=31 // pred_check_branch
              %141 = sbr.rel (0) target = $region36
            $region35: #{autoencoder_forward.7} parent=31 // pred_region
              // Predicated region
              $region48: #{autoencoder_forward.7} parent=35 // pred_check
                _
              $region49: #{autoencoder_forward.7} parent=35 // pred_check_branch
                %173 = sbr.rel (0) target = $region51
              $region50: #{autoencoder_forward.7} parent=35 // pred_region
                loop: start=0, step=1, limit=1
                $region52: #{autoencoder_forward.7} parent=50 // loop_pre_header
                  _
                $region53: #{autoencoder_forward.7} parent=50 // loop_header
                  %s175 = sphi 0, %s179
                  %p176 = scmp.ge.s32.totalorder %s175, 1
                  %s180 = sphi %s137, %s137
                  %s181 = sphi %s134, %s134
                $region54: #{autoencoder_forward.7} parent=50 // loop_header_branch
                  %178 = sbr.rel (%p176) target = $region58
                $region55: #{autoencoder_forward.7} parent=50 // loop_body
                  %v182 = vld [vmem:[%s180] sm:$0xff]
                  %183 = vst [vmem:[%s181] sm:$0xff] %v182
                  %v184 = vld [vmem:[%s180 + $0x10] sm:$0xff]
                  %185 = vst [vmem:[%s181 + $0x8] sm:$0xff] %v184
                  %v186 = vld [vmem:[%s180 + $0x20] sm:$0xff]
                  %187 = vst [vmem:[%s181 + $0x10] sm:$0xff] %v186
                  %v188 = vld [vmem:[%s180 + $0x30] sm:$0xff]
                  %189 = vst [vmem:[%s181 + $0x18] sm:$0xff] %v188
                  %v190 = vld [vmem:[%s180 + $0x40] sm:$0xff]
                  %191 = vst [vmem:[%s181 + $0x20] sm:$0xff] %v190
                  %v192 = vld [vmem:[%s180 + $0x50] sm:$0xff]
                  %193 = vst [vmem:[%s181 + $0x28] sm:$0xff] %v192
                  %v194 = vld [vmem:[%s180 + $0x60] sm:$0xff]
                  %195 = vst [vmem:[%s181 + $0x30] sm:$0xff] %v194
                  %v196 = vld [vmem:[%s180 + $0x70] sm:$0xff]
                  %197 = vst [vmem:[%s181 + $0x38] sm:$0xff] %v196
                  %v198 = vld [vmem:[%s180 + $0x80] sm:$0xff]
                  %199 = vst [vmem:[%s181 + $0x40] sm:$0xff] %v198
                $region56: #{autoencoder_forward.7} parent=50 // loop_footer
                  %s179 = sadd.s32 1, %s175
                $region57: #{autoencoder_forward.7} parent=50 // loop_footer_branch
                  %174 = sbr.rel target = $region53
                $region58: #{autoencoder_forward.7} parent=50 // loop_exit
                  _
              $region51: #{autoencoder_forward.7} parent=35 // pred_fallthru
                _
              // Predicated region
              $region59: #{autoencoder_forward.7} parent=35 // pred_check
                _
              $region60: #{autoencoder_forward.7} parent=35 // pred_check_branch
                %201 = sbr.rel target = $region62
              $region61: #{autoencoder_forward.7} parent=35 // pred_region
                _
              $region62: #{autoencoder_forward.7} parent=35 // pred_fallthru
                _
            $region36: #{autoencoder_forward.7} parent=31 // pred_fallthru
              _
            // Predicated region
            $region37: #{autoencoder_forward.7} parent=31 // pred_check
              _
            $region38: #{autoencoder_forward.7} parent=31 // pred_check_branch
              %143 = sbr.rel target = $region40
            $region39: #{autoencoder_forward.7} parent=31 // pred_region
              %s145 = ssub.s32 256, 1
              loop: start=0, step=1, limit=1
              $region41: #{autoencoder_forward.7} parent=39 // loop_pre_header
                _
              $region42: #{autoencoder_forward.7} parent=39 // loop_header
                %s147 = sphi 0, %s151
                %p148 = scmp.ge.s32.totalorder %s147, 1
                %s152 = sphi %s137, %s137
                %s153 = sphi %s134, %s134
              $region43: #{autoencoder_forward.7} parent=39 // loop_header_branch
                %150 = sbr.rel (%p148) target = $region47
              $region44: #{autoencoder_forward.7} parent=39 // loop_body
                %v154 = vld [vmem:[%s152] sm:%s145]
                %155 = vst [vmem:[%s153] sm:%s145] %v154
                %v156 = vld [vmem:[%s152 + $0x10] sm:%s145]
                %157 = vst [vmem:[%s153 + $0x8] sm:%s145] %v156
                %v158 = vld [vmem:[%s152 + $0x20] sm:%s145]
                %159 = vst [vmem:[%s153 + $0x10] sm:%s145] %v158
                %v160 = vld [vmem:[%s152 + $0x30] sm:%s145]
                %161 = vst [vmem:[%s153 + $0x18] sm:%s145] %v160
                %v162 = vld [vmem:[%s152 + $0x40] sm:%s145]
                %163 = vst [vmem:[%s153 + $0x20] sm:%s145] %v162
                %v164 = vld [vmem:[%s152 + $0x50] sm:%s145]
                %165 = vst [vmem:[%s153 + $0x28] sm:%s145] %v164
                %v166 = vld [vmem:[%s152 + $0x60] sm:%s145]
                %167 = vst [vmem:[%s153 + $0x30] sm:%s145] %v166
                %v168 = vld [vmem:[%s152 + $0x70] sm:%s145]
                %169 = vst [vmem:[%s153 + $0x38] sm:%s145] %v168
                %v170 = vld [vmem:[%s152 + $0x80] sm:%s145]
                %171 = vst [vmem:[%s153 + $0x40] sm:%s145] %v170
              $region45: #{autoencoder_forward.7} parent=39 // loop_footer
                %s151 = sadd.s32 1, %s147
              $region46: #{autoencoder_forward.7} parent=39 // loop_footer_branch
                %146 = sbr.rel target = $region42
              $region47: #{autoencoder_forward.7} parent=39 // loop_exit
                _
            $region40: #{autoencoder_forward.7} parent=31 // pred_fallthru
              _
          $region32: #{autoencoder_forward.7} parent=27 // pred_fallthru
            _
          %202 = vnop
        $region28: #{autoencoder_forward.7} parent=23 // pred_fallthru
          _
      $region24: #{autoencoder_forward.7} parent=5 // pred_fallthru
        _
      %p203 = scmp.le.s32.totalorder 1, %s9
      %p204 = scmp.lt.s32.totalorder %s9, 3
      %p205 = pnand %p203, %p204
      %p206 = pneg %p205
      // Predicated region
      $region63: #{autoencoder_forward.7} parent=5 // pred_check
        _
      $region64: #{autoencoder_forward.7} parent=5 // pred_check_branch
        %208 = sbr.rel (%p205) target = $region66
      $region65: #{autoencoder_forward.7} parent=5 // pred_region
        %s209 = ssub.s32 %s9, 1
        %s210 = sand.u32 %s22, 1
        %s211 = sand.u32 %s22, 1
        %s212 = smul.addr %s211, 72
        %s213 = scalar_lea.vmem [#allocation2], %s212
        // Predicated region
        $region67: #{autoencoder_forward.7} parent=65 // pred_check
          %p214 = pneg %p35
        $region68: #{autoencoder_forward.7} parent=65 // pred_check_branch
          %216 = sbr.rel (%p214) target = $region70
        $region69: #{autoencoder_forward.7} parent=65 // pred_region
          _
        $region70: #{autoencoder_forward.7} parent=65 // pred_fallthru
          _
        %s217 = sand.u32 %s22, 1
        %s218 = sand.u32 %s22, 1
        %s219 = smul.addr %s218, 72
        %s220 = scalar_lea.vmem [#allocation2], %s219
        %p221 = pneg %p35
        %p222 = pneg %p32
        %p223 = pneg %p56
        %p224 = pneg %p53
        %p225 = pneg %p77
        %p226 = pneg %p74
        %p227 = pneg %p103
        %p228 = pneg %p100
        %s229 = smul.u32 2, %s14
        %p230 = scmp.lt.s32.totalorder %s229, 3
        %s231 = scalar_select %p230, %s229, 3
        %s232 = smul.addr %s231, 8
        %s233 = scalar_lea.vmem %s3, %s232
        %s234 = smul.u32 2, %s14
        %s235 = smul.u32 2, %s14
        %p236 = scmp.lt.s32.totalorder %s235, 3
        %s237 = scalar_select %p236, %s235, 3
        %s238 = smul.addr %s237, 8
        %s239 = scalar_lea.vmem %s3, %s238
        %s240 = smul.u32 2, %s14
        %v242 = vld [vmem:[%s1] sm:$0xf]
        %v243 = vld [vmem:[%s213] sm:$0xff]
        %v244 = vld [vmem:[%s213 + $0x8] sm:$0xff]
        %v245 = vld [vmem:[%s213 + $0x10] sm:$0xff]
        %v246 = vld [vmem:[%s213 + $0x18] sm:$0xff]
        %v247 = vld [vmem:[%s213 + $0x20] sm:$0xff]
        %v248 = vld [vmem:[%s213 + $0x28] sm:$0xff]
        %v249 = vld [vmem:[%s213 + $0x30] sm:$0xff]
        %v250 = vld [vmem:[%s213 + $0x38] sm:$0xff]
        %v251 = vld [vmem:[%s213 + $0x40] sm:$0xff]
        %v252 = vld [vmem:[%s2] sm:$0xff]
        %254 = vset.pattern.permute.xlu0 0
        %255 = vperm.xlu0 %254, %v252
        %v256 = vpop.permute.xlu0 %255
        %v267 = vunpack.c.l.b16 %v243
        %v268 = vunpack.c.h.b16 %v243
        %v269 = vunpack.c.l.b16 %v244
        %v270 = vunpack.c.h.b16 %v244
        %v271 = vunpack.c.l.b16 %v245
        %v272 = vunpack.c.h.b16 %v245
        %v273 = vunpack.c.l.b16 %v246
        %v274 = vunpack.c.h.b16 %v246
        %v275 = vunpack.c.l.b16 %v247
        %v276 = vunpack.c.h.b16 %v247
        %v277 = vunpack.c.l.b16 %v248
        %v278 = vunpack.c.h.b16 %v248
        %v279 = vunpack.c.l.b16 %v249
        %v280 = vunpack.c.h.b16 %v249
        %v281 = vunpack.c.l.b16 %v250
        %v282 = vunpack.c.h.b16 %v250
        %v283 = vunpack.c.l.b16 %v251
        %v284 = vunpack.c.h.b16 %v251
        %v285 = vpack.c.b16 %v269, %v267
        %v286 = vpack.c.b16 %v270, %v268
        %v287 = vpack.c.b16 %v273, %v271
        %v288 = vpack.c.b16 %v274, %v272
        %v289 = vpack.c.b16 %v277, %v275
        %v290 = vpack.c.b16 %v278, %v276
        %v291 = vpack.c.b16 %v281, %v279
        %v292 = vpack.c.b16 %v282, %v280
        %v293 = vpack.c.b16 %v283, %v283
        %v294 = vpack.c.b16 %v284, %v284
        %vm303 = vcmask 588800
        %v305 = vsel %vm303, %v242, 0
        %vm307 = vcmask 1043456
        %v309 = vsel %vm307, %v293, 0
        %v312 = vsel %vm307, %v294, 0
        %314 = vmatpush.bf16.msra.mxu0 0
        %315 = vmatpush.bf16.msra.mxu0 0
        %316 = vmatpush.bf16.msra.mxu0 0
        %317 = vmatpush.bf16.msra.mxu0 %v309
        %318 = vmatpush.bf16.msra.mxu0 %v291
        %319 = vmatpush.bf16.msra.mxu0 %v289
        %320 = vmatpush.bf16.msra.mxu0 %v287
        %321 = vmatpush.bf16.msra.mxu0 %v285
        %322 = vmatmul.bf16.gmra.mxu0 %v305
        %v323 = vpop.f32.mrf.mxu0
        %v324 = vadd.f32 %v256, %v323
        %v325 = vpop.f32.mrf.mxu0
        %326 = vdwg.mxu0
        %327 = vmatpush.bf16.msra.mxu0 0
        %328 = vmatpush.bf16.msra.mxu0 0
        %329 = vmatpush.bf16.msra.mxu0 0
        %330 = vmatpush.bf16.msra.mxu0 %v312
        %331 = vmatpush.bf16.msra.mxu0 %v292
        %332 = vmatpush.bf16.msra.mxu0 %v290
        %333 = vmatpush.bf16.msra.mxu0 %v288
        %334 = vmatpush.bf16.msra.mxu0 %v286
        %335 = vmatmul.bf16.gmra.mxu0 %v305
        %v336 = vpop.f32.mrf.mxu0
        %v337 = vadd.f32 %v256, %v336
        %v338 = vpop.f32.mrf.mxu0
        %339 = vdwg.mxu0
        %v340 = vsub.f32 0.0, %v324
        %v341 = vsub.f32 0.0, %v337
        %v342 = vmul.f32 %v340, 1.442695
        %v343 = vpow.pop %v342
        %v344 = vmul.f32 %v341, 1.442695
        %v345 = vpow.pop %v344
        %v346 = vadd.f32 %v343, 1.0
        %v347 = vadd.f32 %v345, 1.0
        %v348 = vrcp.pop %v346
        %v349 = vrcp.pop %v347
        %350 = vst [vmem:[%s239] sm:$0xff] %v348
        %351 = vst [vmem:[%s239 + $0x8] sm:$0xff] %v349
        %s352 = smul.u32 2, %s14
        %p353 = scmp.lt.s32.totalorder %s352, 3
        %s354 = scalar_select %p353, %s352, 3
        %s355 = smul.addr %s354, 8
        %s356 = scalar_lea.vmem %s3, %s355
        // Predicated region
        $region71: #{autoencoder_forward.7} parent=65 // pred_check
          %p357 = pneg %p100
        $region72: #{autoencoder_forward.7} parent=65 // pred_check_branch
          %359 = sbr.rel (%p357) target = $region74
        $region73: #{autoencoder_forward.7} parent=65 // pred_region
          %s360 = smul.u32 2, %s14
        $region74: #{autoencoder_forward.7} parent=65 // pred_fallthru
          _
      $region66: #{autoencoder_forward.7} parent=5 // pred_fallthru
        _
      %p361 = scmp.le.s32.totalorder 2, %s9
      // Predicated region
      $region75: #{autoencoder_forward.7} parent=5 // pred_check
        %p362 = pneg %p361
      $region76: #{autoencoder_forward.7} parent=5 // pred_check_branch
        %364 = sbr.rel (%p362) target = $region78
      $region77: #{autoencoder_forward.7} parent=5 // pred_region
        %s365 = ssub.s32 %s9, 2
        // Predicated region
        $region79: #{autoencoder_forward.7} parent=77 // pred_check
          %p366 = pneg %p106
        $region80: #{autoencoder_forward.7} parent=77 // pred_check_branch
          %368 = sbr.rel (%p366) target = $region82
        $region81: #{autoencoder_forward.7} parent=77 // pred_region
          %s369 = smul.u32 2, %s15
          %p370 = scmp.lt.s32.totalorder %s369, 3
          %s371 = scalar_select %p370, %s369, 3
          %s372 = smul.addr %s371, 8
          %s373 = scalar_lea.vmem %s3, %s372
        $region82: #{autoencoder_forward.7} parent=77 // pred_fallthru
          _
      $region78: #{autoencoder_forward.7} parent=5 // pred_fallthru
        _
    $region6: #{autoencoder_forward.7} parent=1 // loop_footer
      %s13 = sadd.s32 1, %s9
    $region7: #{autoencoder_forward.7} parent=1 // loop_footer_branch
      %8 = sbr.rel target = $region3
    $region8: #{autoencoder_forward.7} parent=1 // loop_exit
      _

</llo_original>
